<compile_context>
chip_gen: v6e
topology: v6e:2x2x1
jax: 0.10.0
libtpu: 0.0.40
codegen_flags: <defaults>
</compile_context>

<pallas_src>
import functools

import jax
import jax.numpy as jnp
from jax import lax
from jax.experimental import pallas as pl
from jax.experimental.pallas import tpu as pltpu


def _action_selection_kernel(h_ref, w1_ref, b1_ref, w2_ref, b2_ref, *rest, sample):
    if sample:
        g_ref, logp_ref, act_ref = rest
    else:
        logp_ref, act_ref = rest

    # ---- two tiny matmuls on the MXU (f32 accumulate), elementwise in f32 ----
    h = h_ref[...]                                                    # (B, Din)
    feat = jnp.maximum(
        jnp.dot(h, w1_ref[...], preferred_element_type=jnp.float32) + b1_ref[...],
        0.0)                                                          # (B, Hd) f32
    mu = jnp.dot(feat.astype(w2_ref.dtype), w2_ref[...],
                 preferred_element_type=jnp.float32) + b2_ref[...]    # (B, O_pad) f32

    # Work transposed so batch lives in the lane dim -> lane-dense (1, B) outputs.
    mu_t = mu.T                                                       # (O_pad, B)
    o_pad = mu_t.shape[0]

    # logsumexp over actions (padded rows carry -1e30 bias -> exp underflows to 0).
    m = jnp.max(mu_t, axis=0, keepdims=True)                          # (1, B)
    lse = m + jnp.log(jnp.sum(jnp.exp(mu_t - m), axis=0, keepdims=True))

    row = lax.broadcasted_iota(jnp.int32, mu_t.shape, 0)              # action index

    if sample:
        # Gumbel-max categorical sampling; constant-per-column shift (lse) is
        # irrelevant for the argmax, so add noise directly to mu.
        scores = mu_t + g_ref[...]
        smax = jnp.max(scores, axis=0, keepdims=True)
        # First-max-wins argmax. (If scores held NaN, idx would be o_pad; inputs
        # are assumed finite here.)
        idx = jnp.min(jnp.where(scores == smax, row, o_pad), axis=0, keepdims=True)
        mu_sel = jnp.sum(jnp.where(row == idx, mu_t, 0.0), axis=0, keepdims=True)
    else:
        # Eval: argmax of softmax == argmax of mu; selected logit is just m.
        idx = jnp.min(jnp.where(mu_t == m, row, o_pad), axis=0, keepdims=True)
        mu_sel = m

    logp_ref[...] = mu_sel - lse                                      # (1, B) f32
    act_ref[...] = idx.astype(jnp.int32)                              # (1, B) i32


def prepare_params(fc_w, fc_b, fc_lt_w, fc_lt_b, *,
                   param_dtype=jnp.float32, lane_pad=128):
    """One-time conversion of PyTorch Linear params into the kernel layout.

    fc_w: (hid, in), fc_b: (hid,), fc_lt_w: (out, hid), fc_lt_b: (out,)
    Returns (w1 (in,hid), b1 (1,hid), w2 (hid,O_pad), b2 (1,O_pad), num_actions)
    with the output dim padded to a multiple of `lane_pad`; padded columns get
    zero weights and a -1e30 bias so they never win softmax/argmax.
    """
    hid, din = fc_w.shape
    out = fc_lt_w.shape[0]
    o_pad = ((out + lane_pad - 1) // lane_pad) * lane_pad
    w1 = jnp.asarray(fc_w).T.astype(param_dtype)                       # (Din, Hd)
    b1 = jnp.asarray(fc_b).reshape(1, hid).astype(jnp.float32)
    w2 = jnp.zeros((hid, o_pad), param_dtype).at[:, :out].set(
        jnp.asarray(fc_lt_w).T.astype(param_dtype))                    # (Hd, O_pad)
    b2 = jnp.full((1, o_pad), -1e30, jnp.float32).at[0, :out].set(
        jnp.asarray(fc_lt_b).astype(jnp.float32))
    return (w1, b1, w2, b2, out)


def action_selection_forward(h_t, params, key=None, *, sample=True, b_tile=None):
    """h_t: (1, B, input_size) or (B, input_size). Returns (log_prob (B,), action (B,)).

    key     : jax.random key, required when sample=True (vary it per RL step!).
    b_tile  : optional batch tile; when set (B % b_tile == 0, b_tile % 128 == 0) the
              batch is processed over a "parallel" grid (shards across v7x's 2 TCs).
    """
    w1, b1, w2, b2, _ = params
    h = jnp.squeeze(h_t, axis=0) if h_t.ndim == 3 else h_t
    h = lax.stop_gradient(h).astype(w1.dtype)          # .detach(); no-op cast for f32
    B, din = h.shape
    hd = w1.shape[1]
    o_pad = w2.shape[1]

    kernel = functools.partial(_action_selection_kernel, sample=sample)

    args = [h, w1, b1, w2, b2]
    if sample:
        if key is None:
            raise ValueError("sample=True requires a jax.random key (vary per step).")
        # TODO(synk): on real TPU this could use the in-kernel hardware PRNG
        # (pltpu.prng_seed / prng_random_bits); it has no interpret/CPU lowering,
        # so the Gumbel noise is generated here and passed in lane-dense.
        args.append(jax.random.gumbel(key, (o_pad, B), dtype=jnp.float32))

    out_shape = (jax.ShapeDtypeStruct((1, B), jnp.float32),
                 jax.ShapeDtypeStruct((1, B), jnp.int32))

    if b_tile is None or b_tile >= B:
        vmem = pl.BlockSpec(memory_space=pltpu.MemorySpace.VMEM)
        logp, act = pl.pallas_call(
            kernel,
            in_specs=[vmem] * len(args),
            out_specs=(vmem, vmem),
            out_shape=out_shape,
        )(*args)
    else:
        assert B % b_tile == 0, "b_tile must divide the batch"
        in_specs = [
            pl.BlockSpec((b_tile, din), lambda i: (i, 0)),   # h: tile the batch
            pl.BlockSpec((din, hd), lambda i: (0, 0)),       # weights stay resident
            pl.BlockSpec((1, hd), lambda i: (0, 0)),
            pl.BlockSpec((hd, o_pad), lambda i: (0, 0)),
            pl.BlockSpec((1, o_pad), lambda i: (0, 0)),
        ]
        if sample:
            in_specs.append(pl.BlockSpec((o_pad, b_tile), lambda i: (0, i)))
        logp, act = pl.pallas_call(
            kernel,
            grid=(B // b_tile,),
            in_specs=in_specs,
            out_specs=(pl.BlockSpec((1, b_tile), lambda i: (0, i)),
                       pl.BlockSpec((1, b_tile), lambda i: (0, i))),
            out_shape=out_shape,
            compiler_params=pltpu.CompilerParams(
                dimension_semantics=("parallel",)),
        )(*args)

    return logp[0], act[0]


def _reference_eval(h_t, pt_params):
    """Plain-JAX reference for the sample=False path, PyTorch-layout params."""
    fc_w, fc_b, fc_lt_w, fc_lt_b = pt_params
    h = jnp.squeeze(h_t, axis=0)
    feat = jax.nn.relu(h @ fc_w.T + fc_b)
    mu = feat @ fc_lt_w.T + fc_lt_b
    p = jax.nn.softmax(mu, axis=-1)
    return jnp.log(jnp.max(p, axis=-1)), jnp.argmax(p, axis=-1).astype(jnp.int32)


if __name__ == "__main__":
    # Make reference matmuls full-f32 so the kernel/reference comparison is tight.
    jax.config.update("jax_default_matmul_precision", "highest")

    key = jax.random.PRNGKey(0)
    B, input_size, output_size = 8, 64, 4
    hid_size = input_size // 2

    k_h, k_w1, k_b1, k_w2, k_b2, k_g1, k_g2, k_hL = jax.random.split(key, 8)
    h_t = jax.random.normal(k_h, (1, B, input_size), dtype=jnp.float32)
    # PyTorch-layout Linear parameters: weight (out, in), bias (out,)
    fc_w = jax.random.normal(k_w1, (hid_size, input_size), jnp.float32) * 0.1
    fc_b = jax.random.normal(k_b1, (hid_size,), jnp.float32) * 0.1
    fc_lt_w = jax.random.normal(k_w2, (output_size, hid_size), jnp.float32) * 0.1
    fc_lt_b = jax.random.normal(k_b2, (output_size,), jnp.float32) * 0.1
    pt_params = (fc_w, fc_b, fc_lt_w, fc_lt_b)

    # One-time parameter preparation (transpose / cast / lane-pad the output dim).
    params = prepare_params(*pt_params)

    # --- training path: Categorical sampling via Gumbel-max ---
    lp_s, a_s = action_selection_forward(h_t, params, key=k_g1, sample=True)
    jax.block_until_ready((lp_s, a_s))
    assert lp_s.shape == (B,) and a_s.shape == (B,)
    assert bool(jnp.all((a_s >= 0) & (a_s < output_size)))
    assert bool(jnp.all(lp_s <= 0.0))

    # --- eval path: argmax + log(max prob), checked against plain-JAX reference ---
    lp_e, a_e = action_selection_forward(h_t, params, sample=False)
    jax.block_until_ready((lp_e, a_e))
    ref_lp, ref_a = _reference_eval(h_t, pt_params)
    assert bool(jnp.all(a_e == ref_a))
    assert bool(jnp.allclose(lp_e, ref_lp, atol=1e-4, rtol=1e-4))

    # --- batched path: amortize the fixed per-call cost; "parallel" grid over the
    #     batch shards across the two TensorCores on v7x ---
    B_big, b_tile = 256, 128
    h_big = jax.random.normal(k_hL, (1, B_big, input_size), dtype=jnp.float32)
    lp_b, a_b = action_selection_forward(h_big, params, key=k_g2,
                                         sample=True, b_tile=b_tile)
    jax.block_until_ready((lp_b, a_b))
    assert lp_b.shape == (B_big,) and a_b.shape == (B_big,)
    assert bool(jnp.all((a_b >= 0) & (a_b < output_size)))

    lp_be, a_be = action_selection_forward(h_big, params, sample=False, b_tile=b_tile)
    jax.block_until_ready((lp_be, a_be))
    ref_lp_b, ref_a_b = _reference_eval(h_big, pt_params)
    assert bool(jnp.all(a_be == ref_a_b))
    assert bool(jnp.allclose(lp_be, ref_lp_b, atol=1e-4, rtol=1e-4))

    # --- bf16-weight option (halves weight/activation DMA on v6e/v7x) ---
    params_bf16 = prepare_params(*pt_params, param_dtype=jnp.bfloat16)
    lp_h, a_h = action_selection_forward(h_t, params_bf16, key=k_g1, sample=True)
    jax.block_until_ready((lp_h, a_h))
    assert bool(jnp.all((a_h >= 0) & (a_h < output_size)))
    assert bool(jnp.all(lp_h <= 0.0))

    print("KERNEL_OK")
</pallas_src>

<mosaic_0001>
module attributes {stable_mosaic.version = 11 : i64} {
  func.func @_action_selection_kernel(%arg0: memref<8x64xf32, #tpu.memory_space<vmem>>, %arg1: memref<64x32xf32, #tpu.memory_space<vmem>>, %arg2: memref<1x32xf32, #tpu.memory_space<vmem>>, %arg3: memref<32x128xf32, #tpu.memory_space<vmem>>, %arg4: memref<1x128xf32, #tpu.memory_space<vmem>>, %arg5: memref<128x8xf32, #tpu.memory_space<vmem>>, %arg6: memref<1x8xf32, #tpu.memory_space<vmem>>, %arg7: memref<1x8xi32, #tpu.memory_space<vmem>>) attributes {dimension_semantics = [], scalar_prefetch = 0 : i64, scratch_operands = 0 : i64, tpu.core_type = #tpu.core_type<tc>} {
    %c0 = arith.constant 0 : index
    %c0_0 = arith.constant 0 : index
    %0 = vector.load %arg0[%c0, %c0_0] : memref<8x64xf32, #tpu.memory_space<vmem>>, vector<8x64xf32>
    %c0_1 = arith.constant 0 : index
    %c0_2 = arith.constant 0 : index
    %1 = vector.load %arg1[%c0_1, %c0_2] : memref<64x32xf32, #tpu.memory_space<vmem>>, vector<64x32xf32>
    %cst = arith.constant dense<0.000000e+00> : vector<8x32xf32>
    %2 = tpu.matmul %0, %1, %cst {dimension_numbers = #tpu.dot_dimension_numbers<[1], [0], [0], [1], [0, 0, 1, 1], [], []>, precision = #tpu.contract_precision<fp32>} : vector<8x64xf32>, vector<64x32xf32>, vector<8x32xf32> -> vector<8x32xf32>
    %c0_3 = arith.constant 0 : index
    %c0_4 = arith.constant 0 : index
    %3 = vector.load %arg2[%c0_3, %c0_4] : memref<1x32xf32, #tpu.memory_space<vmem>>, vector<1x32xf32>
    %4 = vector.broadcast %3 : vector<1x32xf32> to vector<8x32xf32>
    %5 = arith.addf %2, %4 : vector<8x32xf32>
    %cst_5 = arith.constant 0.000000e+00 : f32
    %6 = vector.broadcast %cst_5 : f32 to vector<8x32xf32>
    %7 = arith.maximumf %5, %6 : vector<8x32xf32>
    %c0_6 = arith.constant 0 : index
    %c0_7 = arith.constant 0 : index
    %8 = vector.load %arg3[%c0_6, %c0_7] : memref<32x128xf32, #tpu.memory_space<vmem>>, vector<32x128xf32>
    %cst_8 = arith.constant dense<0.000000e+00> : vector<8x128xf32>
    %9 = tpu.matmul %7, %8, %cst_8 {dimension_numbers = #tpu.dot_dimension_numbers<[1], [0], [0], [1], [0, 0, 1, 1], [], []>, precision = #tpu.contract_precision<fp32>} : vector<8x32xf32>, vector<32x128xf32>, vector<8x128xf32> -> vector<8x128xf32>
    %c0_9 = arith.constant 0 : index
    %c0_10 = arith.constant 0 : index
    %10 = vector.load %arg4[%c0_9, %c0_10] : memref<1x128xf32, #tpu.memory_space<vmem>>, vector<1x128xf32>
    %11 = vector.broadcast %10 : vector<1x128xf32> to vector<8x128xf32>
    %12 = arith.addf %9, %11 : vector<8x128xf32>
    %13 = tpu.transpose %12, [1, 0] : vector<8x128xf32> -> vector<128x8xf32>
    %cst_11 = arith.constant dense<0xFF800000> : vector<8xf32>
    %14 = vector.multi_reduction <maximumf>, %13, %cst_11 [0] : vector<128x8xf32> to vector<8xf32>
    %15 = vector.shape_cast %14 : vector<8xf32> to vector<1x8xf32>
    %16 = vector.broadcast %15 : vector<1x8xf32> to vector<128x8xf32>
    %17 = arith.subf %13, %16 : vector<128x8xf32>
    %18 = math.exp %17 : vector<128x8xf32>
    %cst_12 = arith.constant dense<0.000000e+00> : vector<8xf32>
    %19 = vector.multi_reduction <add>, %18, %cst_12 [0] : vector<128x8xf32> to vector<8xf32>
    %20 = vector.shape_cast %19 : vector<8xf32> to vector<1x8xf32>
    %21 = math.log %20 : vector<1x8xf32>
    %22 = arith.addf %15, %21 : vector<1x8xf32>
    %23 = tpu.iota {dimensions = array<i32: 0>} : vector<128x8xi32>
    %c0_13 = arith.constant 0 : index
    %c0_14 = arith.constant 0 : index
    %24 = vector.load %arg5[%c0_13, %c0_14] : memref<128x8xf32, #tpu.memory_space<vmem>>, vector<128x8xf32>
    %25 = arith.addf %13, %24 : vector<128x8xf32>
    %cst_15 = arith.constant dense<0xFF800000> : vector<8xf32>
    %26 = vector.multi_reduction <maximumf>, %25, %cst_15 [0] : vector<128x8xf32> to vector<8xf32>
    %27 = vector.shape_cast %26 : vector<8xf32> to vector<1x8xf32>
    %28 = vector.broadcast %27 : vector<1x8xf32> to vector<128x8xf32>
    %29 = arith.cmpf oeq, %25, %28 : vector<128x8xf32>
    %c128_i32 = arith.constant 128 : i32
    %30 = vector.broadcast %c128_i32 : i32 to vector<128x8xi32>
    %31 = arith.select %29, %23, %30 : vector<128x8xi1>, vector<128x8xi32>
    %cst_16 = arith.constant dense<2147483647> : vector<8xi32>
    %32 = vector.multi_reduction <minsi>, %31, %cst_16 [0] : vector<128x8xi32> to vector<8xi32>
    %33 = vector.shape_cast %32 : vector<8xi32> to vector<1x8xi32>
    %34 = vector.broadcast %33 : vector<1x8xi32> to vector<128x8xi32>
    %35 = arith.cmpi eq, %23, %34 : vector<128x8xi32>
    %cst_17 = arith.constant 0.000000e+00 : f32
    %36 = vector.broadcast %cst_17 : f32 to vector<128x8xf32>
    %37 = arith.select %35, %13, %36 : vector<128x8xi1>, vector<128x8xf32>
    %cst_18 = arith.constant dense<0.000000e+00> : vector<8xf32>
    %38 = vector.multi_reduction <add>, %37, %cst_18 [0] : vector<128x8xf32> to vector<8xf32>
    %39 = vector.shape_cast %38 : vector<8xf32> to vector<1x8xf32>
    %40 = arith.subf %39, %22 : vector<1x8xf32>
    %c0_19 = arith.constant 0 : index
    %c0_20 = arith.constant 0 : index
    %41 = vector.load %arg6[%c0_19, %c0_20] : memref<1x8xf32, #tpu.memory_space<vmem>>, vector<1x8xf32>
    tpu.vector_store %arg6[%c0_19, %c0_20], %40 {strides = array<i32>} : memref<1x8xf32, #tpu.memory_space<vmem>>, vector<1x8xf32>,
    %c0_21 = arith.constant 0 : index
    %c0_22 = arith.constant 0 : index
    %42 = vector.load %arg7[%c0_21, %c0_22] : memref<1x8xi32, #tpu.memory_space<vmem>>, vector<1x8xi32>
    tpu.vector_store %arg7[%c0_21, %c0_22], %33 {strides = array<i32>} : memref<1x8xi32, #tpu.memory_space<vmem>>, vector<1x8xi32>,
    return
  }
}

</mosaic_0001>

<llo_original>
// kernel: tpu_custom_call.1
$region0: #{tpu_custom_call.1}
  #allocation0 [shape = 'u32[]', space=smem, size = 0x4, offset = 0x4, fixed_abs, tag = 'smem constant byte address 0x4 - core index']
  #allocation1 [shape = 'u32[144,128]{1,0:T(1,128)}', space=vmem, size = 0x12000, scoped, tag = 'internal scratch']
  %s0 = inlined_call_operand.vmem [shape: f32[8,64], index: 0, kind: input, shape index: {}]
  %s1 = inlined_call_operand.vmem [shape: f32[64,32], index: 1, kind: input, shape index: {}]
  %s2 = inlined_call_operand.vmem [shape: f32[1,32], index: 2, kind: input, shape index: {}]
  %s3 = inlined_call_operand.vmem [shape: f32[32,128], index: 3, kind: input, shape index: {}]
  %s4 = inlined_call_operand.vmem [shape: f32[1,128], index: 4, kind: input, shape index: {}]
  %s5 = inlined_call_operand.vmem [shape: f32[128,8], index: 5, kind: input, shape index: {}]
  %s6 = inlined_call_operand.hbm [shape: f32[1,8], index: 6, kind: output, shape index: {0}]
  %s7 = inlined_call_operand.hbm [shape: s32[1,8], index: 7, kind: output, shape index: {1}]
  %8 = xla_tuple %s6, %s7
  %s9 = sld [smem:[#allocation0]]
  $region42: #{tpu_custom_call.1} parent=0
    _
  %s11 = ssub.s32 1, %s9
  %s12 = scalar_select 0, %s11, %s9
  $region1: #{tpu_custom_call.1} parent=0
    #allocation2 [shape = 'u8[512]{0}', space=vmem, size = 0x400, scoped, tag = 'output window, operand 0, single buffered']
    #allocation3 [shape = 's32[1]{0}', space=sflag, size = 0x4, scoped, tag = 'scoped memory for tpu_custom_call.1']
    #allocation4 [shape = 'u8[512]{0}', space=vmem, size = 0x400, scoped, tag = 'output window, operand 1, single buffered']
    #allocation5 [shape = 's32[1]{0}', space=sflag, size = 0x4, scoped, tag = 'scoped memory for tpu_custom_call.1']
    %13 = vsyncpa [#allocation3], 0
    %14 = vsyncpa [#allocation5], 0
    // Predicated region
    $region2: #{tpu_custom_call.1} parent=1 // pred_check
      _
    $region3: #{tpu_custom_call.1} parent=1 // pred_check_branch
      %16 = sbr.rel (0) target = $region5
    $region4: #{tpu_custom_call.1} parent=1 // pred_region
      _
    $region5: #{tpu_custom_call.1} parent=1 // pred_fallthru
      _
    // Predicated region
    $region6: #{tpu_custom_call.1} parent=1 // pred_check
      _
    $region7: #{tpu_custom_call.1} parent=1 // pred_check_branch
      %18 = sbr.rel (0) target = $region9
    $region8: #{tpu_custom_call.1} parent=1 // pred_region
      _
    $region9: #{tpu_custom_call.1} parent=1 // pred_fallthru
      _
    // Predicated region
    $region10: #{tpu_custom_call.1} parent=1 // pred_check
      _
    $region11: #{tpu_custom_call.1} parent=1 // pred_check_branch
      %20 = sbr.rel (0) target = $region13
    $region12: #{tpu_custom_call.1} parent=1 // pred_region
      _
    $region13: #{tpu_custom_call.1} parent=1 // pred_fallthru
      _
    // Predicated region
    $region14: #{tpu_custom_call.1} parent=1 // pred_check
      _
    $region15: #{tpu_custom_call.1} parent=1 // pred_check_branch
      %22 = sbr.rel (0) target = $region17
    $region16: #{tpu_custom_call.1} parent=1 // pred_region
      _
    $region17: #{tpu_custom_call.1} parent=1 // pred_fallthru
      _
    // Predicated region
    $region18: #{tpu_custom_call.1} parent=1 // pred_check
      _
    $region19: #{tpu_custom_call.1} parent=1 // pred_check_branch
      %24 = sbr.rel (0) target = $region21
    $region20: #{tpu_custom_call.1} parent=1 // pred_region
      _
    $region21: #{tpu_custom_call.1} parent=1 // pred_fallthru
      _
    // Predicated region
    $region22: #{tpu_custom_call.1} parent=1 // pred_check
      _
    $region23: #{tpu_custom_call.1} parent=1 // pred_check_branch
      %26 = sbr.rel (0) target = $region25
    $region24: #{tpu_custom_call.1} parent=1 // pred_region
      _
    $region25: #{tpu_custom_call.1} parent=1 // pred_fallthru
      _
    %v27 = vld [vmem:[%s0] sm:$0xff]
    %v28 = vld [vmem:[%s1] sm:$0xff]
    %v29 = vld [vmem:[%s1 + $0x8] sm:$0xff]
    %v30 = vld [vmem:[%s1 + $0x10] sm:$0xff]
    %v31 = vld [vmem:[%s1 + $0x18] sm:$0xff]
    %v32 = vld [vmem:[%s1 + $0x20] sm:$0xff]
    %v33 = vld [vmem:[%s1 + $0x28] sm:$0xff]
    %v34 = vld [vmem:[%s1 + $0x30] sm:$0xff]
    %v35 = vld [vmem:[%s1 + $0x38] sm:$0xff]
    %v36 = vld [vmem:[%s2] sm:$0x1]
    %v38 = vlaneseq
    %v39 = vshrl.u32 %v38, 7
    %v40 = vsub.s32 0, %v39
    %v41 = vrot.slane %v36, %v40
    %vm43 = vcmask 523264
    %v45 = vsel %vm43, %v27, 0
    %47 = vmatprep.subr.mxu0 0.0
    %48 = vmatpush1.msra.mxu0 0.0
    %49 = vmatprep.subr.mxu0 0.0
    %50 = vmatpush1.msra.mxu0 0.0
    %51 = vmatprep.subr.mxu0 0.0
    %52 = vmatpush1.msra.mxu0 0.0
    %53 = vmatprep.subr.mxu0 0.0
    %54 = vmatpush1.msra.mxu0 0.0
    %55 = vmatprep.subr.mxu0 0.0
    %56 = vmatpush1.msra.mxu0 0.0
    %57 = vmatprep.subr.mxu0 0.0
    %58 = vmatpush1.msra.mxu0 0.0
    %59 = vmatprep.subr.mxu0 0.0
    %60 = vmatpush1.msra.mxu0 0.0
    %61 = vmatprep.subr.mxu0 0.0
    %62 = vmatpush1.msra.mxu0 0.0
    %63 = vmatprep.subr.mxu0 0.0
    %v64 = vand.u32 %v35, 4294901760
    %65 = vmatpush1.msra.mxu0 %v64
    %66 = vmatprep.subr.mxu0 0.0
    %v67 = vand.u32 %v34, 4294901760
    %68 = vmatpush1.msra.mxu0 %v67
    %69 = vmatprep.subr.mxu0 0.0
    %v70 = vand.u32 %v33, 4294901760
    %71 = vmatpush1.msra.mxu0 %v70
    %72 = vmatprep.subr.mxu0 0.0
    %v73 = vand.u32 %v32, 4294901760
    %74 = vmatpush1.msra.mxu0 %v73
    %75 = vmatprep.subr.mxu0 0.0
    %v76 = vand.u32 %v31, 4294901760
    %77 = vmatpush1.msra.mxu0 %v76
    %78 = vmatprep.subr.mxu0 0.0
    %v79 = vand.u32 %v30, 4294901760
    %80 = vmatpush1.msra.mxu0 %v79
    %81 = vmatprep.subr.mxu0 0.0
    %v82 = vand.u32 %v29, 4294901760
    %83 = vmatpush1.msra.mxu0 %v82
    %84 = vmatprep.subr.mxu0 0.0
    %v85 = vand.u32 %v28, 4294901760
    %86 = vmatpush1.msra.mxu0 %v85
    %87 = vmatprep.subr.mxu0 0.0
    %88 = vmatpush2.msra.mxu0 0.0
    %89 = vmatprep.subr.mxu0 0.0
    %90 = vmatpush2.msra.mxu0 0.0
    %91 = vmatprep.subr.mxu0 0.0
    %92 = vmatpush2.msra.mxu0 0.0
    %93 = vmatprep.subr.mxu0 0.0
    %94 = vmatpush2.msra.mxu0 0.0
    %95 = vmatprep.subr.mxu0 0.0
    %96 = vmatpush2.msra.mxu0 0.0
    %97 = vmatprep.subr.mxu0 0.0
    %98 = vmatpush2.msra.mxu0 0.0
    %99 = vmatprep.subr.mxu0 0.0
    %100 = vmatpush2.msra.mxu0 0.0
    %101 = vmatprep.subr.mxu0 0.0
    %102 = vmatpush2.msra.mxu0 0.0
    %103 = vmatprep.subr.mxu0 0.0
    %104 = vmatpush2.msra.mxu0 0.0
    %105 = vmatprep.subr.mxu0 0.0
    %106 = vmatpush2.msra.mxu0 0.0
    %107 = vmatprep.subr.mxu0 0.0
    %108 = vmatpush2.msra.mxu0 0.0
    %109 = vmatprep.subr.mxu0 0.0
    %110 = vmatpush2.msra.mxu0 0.0
    %111 = vmatprep.subr.mxu0 0.0
    %112 = vmatpush2.msra.mxu0 0.0
    %113 = vmatprep.subr.mxu0 0.0
    %114 = vmatpush2.msra.mxu0 0.0
    %115 = vmatprep.subr.mxu0 0.0
    %116 = vmatpush2.msra.mxu0 0.0
    %117 = vmatprep.subr.mxu0 0.0
    %118 = vmatpush2.msra.mxu0 0.0
    %119 = vmatprep.mubr.f32.mxu0 0.0
    %v120 = vand.u32 %v45, 4294901760
    %v121 = vsub.f32 %v45, %v120
    %v122 = vand.u32 %v121, 4294901760
    %v123 = vsub.f32 %v121, %v122
    %v124 = vand.u32 %v123, 4294901760
    %125 = vmatmul.mubr.f32.gmra.mxu0 %v124
    %v126 = vpop.f32.mrf.mxu0
    %v127 = vadd.f32 %v41, %v126
    %v128 = vpop.f32.mrf.mxu0
    %129 = vdwg.mxu0
    %130 = vmatprep.subr.mxu0 0.0
    %131 = vmatpush1.msra.mxu0 0.0
    %132 = vmatprep.subr.mxu0 0.0
    %133 = vmatpush1.msra.mxu0 0.0
    %134 = vmatprep.subr.mxu0 0.0
    %135 = vmatpush1.msra.mxu0 0.0
    %136 = vmatprep.subr.mxu0 0.0
    %137 = vmatpush1.msra.mxu0 0.0
    %138 = vmatprep.subr.mxu0 0.0
    %139 = vmatpush1.msra.mxu0 0.0
    %140 = vmatprep.subr.mxu0 0.0
    %141 = vmatpush1.msra.mxu0 0.0
    %142 = vmatprep.subr.mxu0 0.0
    %143 = vmatpush1.msra.mxu0 0.0
    %144 = vmatprep.subr.mxu0 0.0
    %145 = vmatpush1.msra.mxu0 0.0
    %146 = vmatprep.subr.mxu0 0.0
    %v147 = vand.u32 %v35, 4294901760
    %v148 = vsub.f32 %v35, %v147
    %v149 = vand.u32 %v148, 4294901760
    %v150 = vsub.f32 %v148, %v149
    %v151 = vand.u32 %v150, 4294901760
    %152 = vmatpush1.msra.mxu0 %v151
    %153 = vmatprep.subr.mxu0 0.0
    %v154 = vand.u32 %v34, 4294901760
    %v155 = vsub.f32 %v34, %v154
    %v156 = vand.u32 %v155, 4294901760
    %v157 = vsub.f32 %v155, %v156
    %v158 = vand.u32 %v157, 4294901760
    %159 = vmatpush1.msra.mxu0 %v158
    %160 = vmatprep.subr.mxu0 0.0
    %v161 = vand.u32 %v33, 4294901760
    %v162 = vsub.f32 %v33, %v161
    %v163 = vand.u32 %v162, 4294901760
    %v164 = vsub.f32 %v162, %v163
    %v165 = vand.u32 %v164, 4294901760
    %166 = vmatpush1.msra.mxu0 %v165
    %167 = vmatprep.subr.mxu0 0.0
    %v168 = vand.u32 %v32, 4294901760
    %v169 = vsub.f32 %v32, %v168
    %v170 = vand.u32 %v169, 4294901760
    %v171 = vsub.f32 %v169, %v170
    %v172 = vand.u32 %v171, 4294901760
    %173 = vmatpush1.msra.mxu0 %v172
    %174 = vmatprep.subr.mxu0 0.0
    %v175 = vand.u32 %v31, 4294901760
    %v176 = vsub.f32 %v31, %v175
    %v177 = vand.u32 %v176, 4294901760
    %v178 = vsub.f32 %v176, %v177
    %v179 = vand.u32 %v178, 4294901760
    %180 = vmatpush1.msra.mxu0 %v179
    %181 = vmatprep.subr.mxu0 0.0
    %v182 = vand.u32 %v30, 4294901760
    %v183 = vsub.f32 %v30, %v182
    %v184 = vand.u32 %v183, 4294901760
    %v185 = vsub.f32 %v183, %v184
    %v186 = vand.u32 %v185, 4294901760
    %187 = vmatpush1.msra.mxu0 %v186
    %188 = vmatprep.subr.mxu0 0.0
    %v189 = vand.u32 %v29, 4294901760
    %v190 = vsub.f32 %v29, %v189
    %v191 = vand.u32 %v190, 4294901760
    %v192 = vsub.f32 %v190, %v191
    %v193 = vand.u32 %v192, 4294901760
    %194 = vmatpush1.msra.mxu0 %v193
    %195 = vmatprep.subr.mxu0 0.0
    %v196 = vand.u32 %v28, 4294901760
    %v197 = vsub.f32 %v28, %v196
    %v198 = vand.u32 %v197, 4294901760
    %v199 = vsub.f32 %v197, %v198
    %v200 = vand.u32 %v199, 4294901760
    %201 = vmatpush1.msra.mxu0 %v200
    %202 = vmatprep.subr.mxu0 0.0
    %203 = vmatpush2.msra.mxu0 0.0
    %204 = vmatprep.subr.mxu0 0.0
    %205 = vmatpush2.msra.mxu0 0.0
    %206 = vmatprep.subr.mxu0 0.0
    %207 = vmatpush2.msra.mxu0 0.0
    %208 = vmatprep.subr.mxu0 0.0
    %209 = vmatpush2.msra.mxu0 0.0
    %210 = vmatprep.subr.mxu0 0.0
    %211 = vmatpush2.msra.mxu0 0.0
    %212 = vmatprep.subr.mxu0 0.0
    %213 = vmatpush2.msra.mxu0 0.0
    %214 = vmatprep.subr.mxu0 0.0
    %215 = vmatpush2.msra.mxu0 0.0
    %216 = vmatprep.subr.mxu0 0.0
    %217 = vmatpush2.msra.mxu0 0.0
    %218 = vmatprep.subr.mxu0 0.0
    %219 = vmatpush2.msra.mxu0 0.0
    %220 = vmatprep.subr.mxu0 0.0
    %221 = vmatpush2.msra.mxu0 0.0
    %222 = vmatprep.subr.mxu0 0.0
    %223 = vmatpush2.msra.mxu0 0.0
    %224 = vmatprep.subr.mxu0 0.0
    %225 = vmatpush2.msra.mxu0 0.0
    %226 = vmatprep.subr.mxu0 0.0
    %227 = vmatpush2.msra.mxu0 0.0
    %228 = vmatprep.subr.mxu0 0.0
    %229 = vmatpush2.msra.mxu0 0.0
    %230 = vmatprep.subr.mxu0 0.0
    %231 = vmatpush2.msra.mxu0 0.0
    %232 = vmatprep.subr.mxu0 0.0
    %233 = vmatpush2.msra.mxu0 0.0
    %234 = vmatprep.mubr.f32.mxu0 0.0
    %v235 = vand.u32 %v45, 4294901760
    %236 = vmatmul.mubr.f32.gmra.mxu0 %v235
    %v237 = vpop.f32.mrf.mxu0
    %v238 = vadd.f32 %v127, %v237
    %v239 = vpop.f32.mrf.mxu0
    %240 = vdwg.mxu0
    %241 = vmatprep.subr.mxu0 0.0
    %242 = vmatpush1.msra.mxu0 0.0
    %243 = vmatprep.subr.mxu0 0.0
    %244 = vmatpush1.msra.mxu0 0.0
    %245 = vmatprep.subr.mxu0 0.0
    %246 = vmatpush1.msra.mxu0 0.0
    %247 = vmatprep.subr.mxu0 0.0
    %248 = vmatpush1.msra.mxu0 0.0
    %249 = vmatprep.subr.mxu0 0.0
    %250 = vmatpush1.msra.mxu0 0.0
    %251 = vmatprep.subr.mxu0 0.0
    %252 = vmatpush1.msra.mxu0 0.0
    %253 = vmatprep.subr.mxu0 0.0
    %254 = vmatpush1.msra.mxu0 0.0
    %255 = vmatprep.subr.mxu0 0.0
    %256 = vmatpush1.msra.mxu0 0.0
    %257 = vmatprep.subr.mxu0 0.0
    %v258 = vand.u32 %v35, 4294901760
    %v259 = vsub.f32 %v35, %v258
    %260 = vmatpush1.msra.mxu0 %v259
    %261 = vmatprep.subr.mxu0 0.0
    %v262 = vand.u32 %v34, 4294901760
    %v263 = vsub.f32 %v34, %v262
    %264 = vmatpush1.msra.mxu0 %v263
    %265 = vmatprep.subr.mxu0 0.0
    %v266 = vand.u32 %v33, 4294901760
    %v267 = vsub.f32 %v33, %v266
    %268 = vmatpush1.msra.mxu0 %v267
    %269 = vmatprep.subr.mxu0 0.0
    %v270 = vand.u32 %v32, 4294901760
    %v271 = vsub.f32 %v32, %v270
    %272 = vmatpush1.msra.mxu0 %v271
    %273 = vmatprep.subr.mxu0 0.0
    %v274 = vand.u32 %v31, 4294901760
    %v275 = vsub.f32 %v31, %v274
    %276 = vmatpush1.msra.mxu0 %v275
    %277 = vmatprep.subr.mxu0 0.0
    %v278 = vand.u32 %v30, 4294901760
    %v279 = vsub.f32 %v30, %v278
    %280 = vmatpush1.msra.mxu0 %v279
    %281 = vmatprep.subr.mxu0 0.0
    %v282 = vand.u32 %v29, 4294901760
    %v283 = vsub.f32 %v29, %v282
    %284 = vmatpush1.msra.mxu0 %v283
    %285 = vmatprep.subr.mxu0 0.0
    %v286 = vand.u32 %v28, 4294901760
    %v287 = vsub.f32 %v28, %v286
    %288 = vmatpush1.msra.mxu0 %v287
    %289 = vmatprep.subr.mxu0 0.0
    %290 = vmatpush2.msra.mxu0 0.0
    %291 = vmatprep.subr.mxu0 0.0
    %292 = vmatpush2.msra.mxu0 0.0
    %293 = vmatprep.subr.mxu0 0.0
    %294 = vmatpush2.msra.mxu0 0.0
    %295 = vmatprep.subr.mxu0 0.0
    %296 = vmatpush2.msra.mxu0 0.0
    %297 = vmatprep.subr.mxu0 0.0
    %298 = vmatpush2.msra.mxu0 0.0
    %299 = vmatprep.subr.mxu0 0.0
    %300 = vmatpush2.msra.mxu0 0.0
    %301 = vmatprep.subr.mxu0 0.0
    %302 = vmatpush2.msra.mxu0 0.0
    %303 = vmatprep.subr.mxu0 0.0
    %304 = vmatpush2.msra.mxu0 0.0
    %305 = vmatprep.subr.mxu0 0.0
    %306 = vmatpush2.msra.mxu0 0.0
    %307 = vmatprep.subr.mxu0 0.0
    %308 = vmatpush2.msra.mxu0 0.0
    %309 = vmatprep.subr.mxu0 0.0
    %310 = vmatpush2.msra.mxu0 0.0
    %311 = vmatprep.subr.mxu0 0.0
    %312 = vmatpush2.msra.mxu0 0.0
    %313 = vmatprep.subr.mxu0 0.0
    %314 = vmatpush2.msra.mxu0 0.0
    %315 = vmatprep.subr.mxu0 0.0
    %316 = vmatpush2.msra.mxu0 0.0
    %317 = vmatprep.subr.mxu0 0.0
    %318 = vmatpush2.msra.mxu0 0.0
    %319 = vmatprep.subr.mxu0 0.0
    %320 = vmatpush2.msra.mxu0 0.0
    %321 = vmatprep.mubr.f32.mxu0 0.0
    %v322 = vand.u32 %v45, 4294901760
    %v323 = vsub.f32 %v45, %v322
    %324 = vmatmul.mubr.f32.gmra.mxu0 %v323
    %v325 = vpop.f32.mrf.mxu0
    %v326 = vadd.f32 %v238, %v325
    %v327 = vpop.f32.mrf.mxu0
    %328 = vdwg.mxu0
    %329 = vmatprep.subr.mxu0 0.0
    %330 = vmatpush1.msra.mxu0 0.0
    %331 = vmatprep.subr.mxu0 0.0
    %332 = vmatpush1.msra.mxu0 0.0
    %333 = vmatprep.subr.mxu0 0.0
    %334 = vmatpush1.msra.mxu0 0.0
    %335 = vmatprep.subr.mxu0 0.0
    %336 = vmatpush1.msra.mxu0 0.0
    %337 = vmatprep.subr.mxu0 0.0
    %338 = vmatpush1.msra.mxu0 0.0
    %339 = vmatprep.subr.mxu0 0.0
    %340 = vmatpush1.msra.mxu0 0.0
    %341 = vmatprep.subr.mxu0 0.0
    %342 = vmatpush1.msra.mxu0 0.0
    %343 = vmatprep.subr.mxu0 0.0
    %344 = vmatpush1.msra.mxu0 0.0
    %345 = vmatprep.subr.mxu0 0.0
    %v346 = vand.u32 %v35, 4294901760
    %347 = vmatpush1.msra.mxu0 %v346
    %348 = vmatprep.subr.mxu0 0.0
    %v349 = vand.u32 %v34, 4294901760
    %350 = vmatpush1.msra.mxu0 %v349
    %351 = vmatprep.subr.mxu0 0.0
    %v352 = vand.u32 %v33, 4294901760
    %353 = vmatpush1.msra.mxu0 %v352
    %354 = vmatprep.subr.mxu0 0.0
    %v355 = vand.u32 %v32, 4294901760
    %356 = vmatpush1.msra.mxu0 %v355
    %357 = vmatprep.subr.mxu0 0.0
    %v358 = vand.u32 %v31, 4294901760
    %359 = vmatpush1.msra.mxu0 %v358
    %360 = vmatprep.subr.mxu0 0.0
    %v361 = vand.u32 %v30, 4294901760
    %362 = vmatpush1.msra.mxu0 %v361
    %363 = vmatprep.subr.mxu0 0.0
    %v364 = vand.u32 %v29, 4294901760
    %365 = vmatpush1.msra.mxu0 %v364
    %366 = vmatprep.subr.mxu0 0.0
    %v367 = vand.u32 %v28, 4294901760
    %368 = vmatpush1.msra.mxu0 %v367
    %369 = vmatprep.subr.mxu0 0.0
    %370 = vmatpush2.msra.mxu0 0.0
    %371 = vmatprep.subr.mxu0 0.0
    %372 = vmatpush2.msra.mxu0 0.0
    %373 = vmatprep.subr.mxu0 0.0
    %374 = vmatpush2.msra.mxu0 0.0
    %375 = vmatprep.subr.mxu0 0.0
    %376 = vmatpush2.msra.mxu0 0.0
    %377 = vmatprep.subr.mxu0 0.0
    %378 = vmatpush2.msra.mxu0 0.0
    %379 = vmatprep.subr.mxu0 0.0
    %380 = vmatpush2.msra.mxu0 0.0
    %381 = vmatprep.subr.mxu0 0.0
    %382 = vmatpush2.msra.mxu0 0.0
    %383 = vmatprep.subr.mxu0 0.0
    %384 = vmatpush2.msra.mxu0 0.0
    %385 = vmatprep.subr.mxu0 0.0
    %386 = vmatpush2.msra.mxu0 0.0
    %387 = vmatprep.subr.mxu0 0.0
    %388 = vmatpush2.msra.mxu0 0.0
    %389 = vmatprep.subr.mxu0 0.0
    %390 = vmatpush2.msra.mxu0 0.0
    %391 = vmatprep.subr.mxu0 0.0
    %392 = vmatpush2.msra.mxu0 0.0
    %393 = vmatprep.subr.mxu0 0.0
    %394 = vmatpush2.msra.mxu0 0.0
    %395 = vmatprep.subr.mxu0 0.0
    %396 = vmatpush2.msra.mxu0 0.0
    %397 = vmatprep.subr.mxu0 0.0
    %398 = vmatpush2.msra.mxu0 0.0
    %399 = vmatprep.subr.mxu0 0.0
    %400 = vmatpush2.msra.mxu0 0.0
    %401 = vmatprep.mubr.f32.mxu0 0.0
    %v402 = vand.u32 %v45, 4294901760
    %v403 = vsub.f32 %v45, %v402
    %v404 = vand.u32 %v403, 4294901760
    %405 = vmatmul.mubr.f32.gmra.mxu0 %v404
    %v406 = vpop.f32.mrf.mxu0
    %v407 = vadd.f32 %v326, %v406
    %v408 = vpop.f32.mrf.mxu0
    %409 = vdwg.mxu0
    %410 = vmatprep.subr.mxu0 0.0
    %411 = vmatpush1.msra.mxu0 0.0
    %412 = vmatprep.subr.mxu0 0.0
    %413 = vmatpush1.msra.mxu0 0.0
    %414 = vmatprep.subr.mxu0 0.0
    %415 = vmatpush1.msra.mxu0 0.0
    %416 = vmatprep.subr.mxu0 0.0
    %417 = vmatpush1.msra.mxu0 0.0
    %418 = vmatprep.subr.mxu0 0.0
    %419 = vmatpush1.msra.mxu0 0.0
    %420 = vmatprep.subr.mxu0 0.0
    %421 = vmatpush1.msra.mxu0 0.0
    %422 = vmatprep.subr.mxu0 0.0
    %423 = vmatpush1.msra.mxu0 0.0
    %424 = vmatprep.subr.mxu0 0.0
    %425 = vmatpush1.msra.mxu0 0.0
    %426 = vmatprep.subr.mxu0 0.0
    %v427 = vand.u32 %v35, 4294901760
    %v428 = vsub.f32 %v35, %v427
    %v429 = vand.u32 %v428, 4294901760
    %430 = vmatpush1.msra.mxu0 %v429
    %431 = vmatprep.subr.mxu0 0.0
    %v432 = vand.u32 %v34, 4294901760
    %v433 = vsub.f32 %v34, %v432
    %v434 = vand.u32 %v433, 4294901760
    %435 = vmatpush1.msra.mxu0 %v434
    %436 = vmatprep.subr.mxu0 0.0
    %v437 = vand.u32 %v33, 4294901760
    %v438 = vsub.f32 %v33, %v437
    %v439 = vand.u32 %v438, 4294901760
    %440 = vmatpush1.msra.mxu0 %v439
    %441 = vmatprep.subr.mxu0 0.0
    %v442 = vand.u32 %v32, 4294901760
    %v443 = vsub.f32 %v32, %v442
    %v444 = vand.u32 %v443, 4294901760
    %445 = vmatpush1.msra.mxu0 %v444
    %446 = vmatprep.subr.mxu0 0.0
    %v447 = vand.u32 %v31, 4294901760
    %v448 = vsub.f32 %v31, %v447
    %v449 = vand.u32 %v448, 4294901760
    %450 = vmatpush1.msra.mxu0 %v449
    %451 = vmatprep.subr.mxu0 0.0
    %v452 = vand.u32 %v30, 4294901760
    %v453 = vsub.f32 %v30, %v452
    %v454 = vand.u32 %v453, 4294901760
    %455 = vmatpush1.msra.mxu0 %v454
    %456 = vmatprep.subr.mxu0 0.0
    %v457 = vand.u32 %v29, 4294901760
    %v458 = vsub.f32 %v29, %v457
    %v459 = vand.u32 %v458, 4294901760
    %460 = vmatpush1.msra.mxu0 %v459
    %461 = vmatprep.subr.mxu0 0.0
    %v462 = vand.u32 %v28, 4294901760
    %v463 = vsub.f32 %v28, %v462
    %v464 = vand.u32 %v463, 4294901760
    %465 = vmatpush1.msra.mxu0 %v464
    %466 = vmatprep.subr.mxu0 0.0
    %467 = vmatpush2.msra.mxu0 0.0
    %468 = vmatprep.subr.mxu0 0.0
    %469 = vmatpush2.msra.mxu0 0.0
    %470 = vmatprep.subr.mxu0 0.0
    %471 = vmatpush2.msra.mxu0 0.0
    %472 = vmatprep.subr.mxu0 0.0
    %473 = vmatpush2.msra.mxu0 0.0
    %474 = vmatprep.subr.mxu0 0.0
    %475 = vmatpush2.msra.mxu0 0.0
    %476 = vmatprep.subr.mxu0 0.0
    %477 = vmatpush2.msra.mxu0 0.0
    %478 = vmatprep.subr.mxu0 0.0
    %479 = vmatpush2.msra.mxu0 0.0
    %480 = vmatprep.subr.mxu0 0.0
    %481 = vmatpush2.msra.mxu0 0.0
    %482 = vmatprep.subr.mxu0 0.0
    %483 = vmatpush2.msra.mxu0 0.0
    %484 = vmatprep.subr.mxu0 0.0
    %485 = vmatpush2.msra.mxu0 0.0
    %486 = vmatprep.subr.mxu0 0.0
    %487 = vmatpush2.msra.mxu0 0.0
    %488 = vmatprep.subr.mxu0 0.0
    %489 = vmatpush2.msra.mxu0 0.0
    %490 = vmatprep.subr.mxu0 0.0
    %491 = vmatpush2.msra.mxu0 0.0
    %492 = vmatprep.subr.mxu0 0.0
    %493 = vmatpush2.msra.mxu0 0.0
    %494 = vmatprep.subr.mxu0 0.0
    %495 = vmatpush2.msra.mxu0 0.0
    %496 = vmatprep.subr.mxu0 0.0
    %497 = vmatpush2.msra.mxu0 0.0
    %498 = vmatprep.mubr.f32.mxu0 0.0
    %v499 = vand.u32 %v45, 4294901760
    %500 = vmatmul.mubr.f32.gmra.mxu0 %v499
    %v501 = vpop.f32.mrf.mxu0
    %v502 = vadd.f32 %v407, %v501
    %v503 = vpop.f32.mrf.mxu0
    %504 = vdwg.mxu0
    %505 = vmatprep.subr.mxu0 0.0
    %506 = vmatpush1.msra.mxu0 0.0
    %507 = vmatprep.subr.mxu0 0.0
    %508 = vmatpush1.msra.mxu0 0.0
    %509 = vmatprep.subr.mxu0 0.0
    %510 = vmatpush1.msra.mxu0 0.0
    %511 = vmatprep.subr.mxu0 0.0
    %512 = vmatpush1.msra.mxu0 0.0
    %513 = vmatprep.subr.mxu0 0.0
    %514 = vmatpush1.msra.mxu0 0.0
    %515 = vmatprep.subr.mxu0 0.0
    %516 = vmatpush1.msra.mxu0 0.0
    %517 = vmatprep.subr.mxu0 0.0
    %518 = vmatpush1.msra.mxu0 0.0
    %519 = vmatprep.subr.mxu0 0.0
    %520 = vmatpush1.msra.mxu0 0.0
    %521 = vmatprep.subr.mxu0 0.0
    %v522 = vand.u32 %v35, 4294901760
    %523 = vmatpush1.msra.mxu0 %v522
    %524 = vmatprep.subr.mxu0 0.0
    %v525 = vand.u32 %v34, 4294901760
    %526 = vmatpush1.msra.mxu0 %v525
    %527 = vmatprep.subr.mxu0 0.0
    %v528 = vand.u32 %v33, 4294901760
    %529 = vmatpush1.msra.mxu0 %v528
    %530 = vmatprep.subr.mxu0 0.0
    %v531 = vand.u32 %v32, 4294901760
    %532 = vmatpush1.msra.mxu0 %v531
    %533 = vmatprep.subr.mxu0 0.0
    %v534 = vand.u32 %v31, 4294901760
    %535 = vmatpush1.msra.mxu0 %v534
    %536 = vmatprep.subr.mxu0 0.0
    %v537 = vand.u32 %v30, 4294901760
    %538 = vmatpush1.msra.mxu0 %v537
    %539 = vmatprep.subr.mxu0 0.0
    %v540 = vand.u32 %v29, 4294901760
    %541 = vmatpush1.msra.mxu0 %v540
    %542 = vmatprep.subr.mxu0 0.0
    %v543 = vand.u32 %v28, 4294901760
    %544 = vmatpush1.msra.mxu0 %v543
    %545 = vmatprep.subr.mxu0 0.0
    %546 = vmatpush2.msra.mxu0 0.0
    %547 = vmatprep.subr.mxu0 0.0
    %548 = vmatpush2.msra.mxu0 0.0
    %549 = vmatprep.subr.mxu0 0.0
    %550 = vmatpush2.msra.mxu0 0.0
    %551 = vmatprep.subr.mxu0 0.0
    %552 = vmatpush2.msra.mxu0 0.0
    %553 = vmatprep.subr.mxu0 0.0
    %554 = vmatpush2.msra.mxu0 0.0
    %555 = vmatprep.subr.mxu0 0.0
    %556 = vmatpush2.msra.mxu0 0.0
    %557 = vmatprep.subr.mxu0 0.0
    %558 = vmatpush2.msra.mxu0 0.0
    %559 = vmatprep.subr.mxu0 0.0
    %560 = vmatpush2.msra.mxu0 0.0
    %561 = vmatprep.subr.mxu0 0.0
    %562 = vmatpush2.msra.mxu0 0.0
    %563 = vmatprep.subr.mxu0 0.0
    %564 = vmatpush2.msra.mxu0 0.0
    %565 = vmatprep.subr.mxu0 0.0
    %566 = vmatpush2.msra.mxu0 0.0
    %567 = vmatprep.subr.mxu0 0.0
    %568 = vmatpush2.msra.mxu0 0.0
    %569 = vmatprep.subr.mxu0 0.0
    %570 = vmatpush2.msra.mxu0 0.0
    %571 = vmatprep.subr.mxu0 0.0
    %572 = vmatpush2.msra.mxu0 0.0
    %573 = vmatprep.subr.mxu0 0.0
    %574 = vmatpush2.msra.mxu0 0.0
    %575 = vmatprep.subr.mxu0 0.0
    %576 = vmatpush2.msra.mxu0 0.0
    %577 = vmatprep.mubr.f32.mxu0 0.0
    %v578 = vand.u32 %v45, 4294901760
    %579 = vmatmul.mubr.f32.gmra.mxu0 %v578
    %v580 = vpop.f32.mrf.mxu0
    %v581 = vadd.f32 %v502, %v580
    %v582 = vpop.f32.mrf.mxu0
    %583 = vdwg.mxu0
    %v584 = vmax.f32 %v581, 0.0
    %v585 = vld [vmem:[%s3] sm:$0xff]
    %v586 = vld [vmem:[%s3 + $0x8] sm:$0xff]
    %v587 = vld [vmem:[%s3 + $0x10] sm:$0xff]
    %v588 = vld [vmem:[%s3 + $0x18] sm:$0xff]
    %v589 = vld [vmem:[%s4] sm:$0x1]
    %v591 = vlaneseq
    %v592 = vshrl.u32 %v591, 7
    %v593 = vsub.s32 0, %v592
    %v594 = vrot.slane %v589, %v593
    %vm596 = vcmask 261120
    %v598 = vsel %vm596, %v584, 0
    %600 = vmatprep.subr.mxu0 0.0
    %601 = vmatpush1.msra.mxu0 0.0
    %602 = vmatprep.subr.mxu0 0.0
    %603 = vmatpush1.msra.mxu0 0.0
    %604 = vmatprep.subr.mxu0 0.0
    %605 = vmatpush1.msra.mxu0 0.0
    %606 = vmatprep.subr.mxu0 0.0
    %607 = vmatpush1.msra.mxu0 0.0
    %608 = vmatprep.subr.mxu0 0.0
    %609 = vmatpush1.msra.mxu0 0.0
    %610 = vmatprep.subr.mxu0 0.0
    %611 = vmatpush1.msra.mxu0 0.0
    %612 = vmatprep.subr.mxu0 0.0
    %613 = vmatpush1.msra.mxu0 0.0
    %614 = vmatprep.subr.mxu0 0.0
    %615 = vmatpush1.msra.mxu0 0.0
    %616 = vmatprep.subr.mxu0 0.0
    %617 = vmatpush1.msra.mxu0 0.0
    %618 = vmatprep.subr.mxu0 0.0
    %619 = vmatpush1.msra.mxu0 0.0
    %620 = vmatprep.subr.mxu0 0.0
    %621 = vmatpush1.msra.mxu0 0.0
    %622 = vmatprep.subr.mxu0 0.0
    %623 = vmatpush1.msra.mxu0 0.0
    %624 = vmatprep.subr.mxu0 0.0
    %v625 = vand.u32 %v588, 4294901760
    %626 = vmatpush1.msra.mxu0 %v625
    %627 = vmatprep.subr.mxu0 0.0
    %v628 = vand.u32 %v587, 4294901760
    %629 = vmatpush1.msra.mxu0 %v628
    %630 = vmatprep.subr.mxu0 0.0
    %v631 = vand.u32 %v586, 4294901760
    %632 = vmatpush1.msra.mxu0 %v631
    %633 = vmatprep.subr.mxu0 0.0
    %v634 = vand.u32 %v585, 4294901760
    %635 = vmatpush1.msra.mxu0 %v634
    %636 = vmatprep.subr.mxu0 0.0
    %637 = vmatpush2.msra.mxu0 0.0
    %638 = vmatprep.subr.mxu0 0.0
    %639 = vmatpush2.msra.mxu0 0.0
    %640 = vmatprep.subr.mxu0 0.0
    %641 = vmatpush2.msra.mxu0 0.0
    %642 = vmatprep.subr.mxu0 0.0
    %643 = vmatpush2.msra.mxu0 0.0
    %644 = vmatprep.subr.mxu0 0.0
    %645 = vmatpush2.msra.mxu0 0.0
    %646 = vmatprep.subr.mxu0 0.0
    %647 = vmatpush2.msra.mxu0 0.0
    %648 = vmatprep.subr.mxu0 0.0
    %649 = vmatpush2.msra.mxu0 0.0
    %650 = vmatprep.subr.mxu0 0.0
    %651 = vmatpush2.msra.mxu0 0.0
    %652 = vmatprep.subr.mxu0 0.0
    %653 = vmatpush2.msra.mxu0 0.0
    %654 = vmatprep.subr.mxu0 0.0
    %655 = vmatpush2.msra.mxu0 0.0
    %656 = vmatprep.subr.mxu0 0.0
    %657 = vmatpush2.msra.mxu0 0.0
    %658 = vmatprep.subr.mxu0 0.0
    %659 = vmatpush2.msra.mxu0 0.0
    %660 = vmatprep.subr.mxu0 0.0
    %661 = vmatpush2.msra.mxu0 0.0
    %662 = vmatprep.subr.mxu0 0.0
    %663 = vmatpush2.msra.mxu0 0.0
    %664 = vmatprep.subr.mxu0 0.0
    %665 = vmatpush2.msra.mxu0 0.0
    %666 = vmatprep.subr.mxu0 0.0
    %667 = vmatpush2.msra.mxu0 0.0
    %668 = vmatprep.mubr.f32.mxu0 0.0
    %v669 = vand.u32 %v598, 4294901760
    %v670 = vsub.f32 %v598, %v669
    %v671 = vand.u32 %v670, 4294901760
    %v672 = vsub.f32 %v670, %v671
    %v673 = vand.u32 %v672, 4294901760
    %674 = vmatmul.mubr.f32.gmra.mxu0 %v673
    %v675 = vpop.f32.mrf.mxu0
    %v676 = vadd.f32 %v594, %v675
    %v677 = vpop.f32.mrf.mxu0
    %678 = vdwg.mxu0
    %679 = vmatprep.subr.mxu0 0.0
    %680 = vmatpush1.msra.mxu0 0.0
    %681 = vmatprep.subr.mxu0 0.0
    %682 = vmatpush1.msra.mxu0 0.0
    %683 = vmatprep.subr.mxu0 0.0
    %684 = vmatpush1.msra.mxu0 0.0
    %685 = vmatprep.subr.mxu0 0.0
    %686 = vmatpush1.msra.mxu0 0.0
    %687 = vmatprep.subr.mxu0 0.0
    %688 = vmatpush1.msra.mxu0 0.0
    %689 = vmatprep.subr.mxu0 0.0
    %690 = vmatpush1.msra.mxu0 0.0
    %691 = vmatprep.subr.mxu0 0.0
    %692 = vmatpush1.msra.mxu0 0.0
    %693 = vmatprep.subr.mxu0 0.0
    %694 = vmatpush1.msra.mxu0 0.0
    %695 = vmatprep.subr.mxu0 0.0
    %696 = vmatpush1.msra.mxu0 0.0
    %697 = vmatprep.subr.mxu0 0.0
    %698 = vmatpush1.msra.mxu0 0.0
    %699 = vmatprep.subr.mxu0 0.0
    %700 = vmatpush1.msra.mxu0 0.0
    %701 = vmatprep.subr.mxu0 0.0
    %702 = vmatpush1.msra.mxu0 0.0
    %703 = vmatprep.subr.mxu0 0.0
    %v704 = vand.u32 %v588, 4294901760
    %v705 = vsub.f32 %v588, %v704
    %v706 = vand.u32 %v705, 4294901760
    %v707 = vsub.f32 %v705, %v706
    %v708 = vand.u32 %v707, 4294901760
    %709 = vmatpush1.msra.mxu0 %v708
    %710 = vmatprep.subr.mxu0 0.0
    %v711 = vand.u32 %v587, 4294901760
    %v712 = vsub.f32 %v587, %v711
    %v713 = vand.u32 %v712, 4294901760
    %v714 = vsub.f32 %v712, %v713
    %v715 = vand.u32 %v714, 4294901760
    %716 = vmatpush1.msra.mxu0 %v715
    %717 = vmatprep.subr.mxu0 0.0
    %v718 = vand.u32 %v586, 4294901760
    %v719 = vsub.f32 %v586, %v718
    %v720 = vand.u32 %v719, 4294901760
    %v721 = vsub.f32 %v719, %v720
    %v722 = vand.u32 %v721, 4294901760
    %723 = vmatpush1.msra.mxu0 %v722
    %724 = vmatprep.subr.mxu0 0.0
    %v725 = vand.u32 %v585, 4294901760
    %v726 = vsub.f32 %v585, %v725
    %v727 = vand.u32 %v726, 4294901760
    %v728 = vsub.f32 %v726, %v727
    %v729 = vand.u32 %v728, 4294901760
    %730 = vmatpush1.msra.mxu0 %v729
    %731 = vmatprep.subr.mxu0 0.0
    %732 = vmatpush2.msra.mxu0 0.0
    %733 = vmatprep.subr.mxu0 0.0
    %734 = vmatpush2.msra.mxu0 0.0
    %735 = vmatprep.subr.mxu0 0.0
    %736 = vmatpush2.msra.mxu0 0.0
    %737 = vmatprep.subr.mxu0 0.0
    %738 = vmatpush2.msra.mxu0 0.0
    %739 = vmatprep.subr.mxu0 0.0
    %740 = vmatpush2.msra.mxu0 0.0
    %741 = vmatprep.subr.mxu0 0.0
    %742 = vmatpush2.msra.mxu0 0.0
    %743 = vmatprep.subr.mxu0 0.0
    %744 = vmatpush2.msra.mxu0 0.0
    %745 = vmatprep.subr.mxu0 0.0
    %746 = vmatpush2.msra.mxu0 0.0
    %747 = vmatprep.subr.mxu0 0.0
    %748 = vmatpush2.msra.mxu0 0.0
    %749 = vmatprep.subr.mxu0 0.0
    %750 = vmatpush2.msra.mxu0 0.0
    %751 = vmatprep.subr.mxu0 0.0
    %752 = vmatpush2.msra.mxu0 0.0
    %753 = vmatprep.subr.mxu0 0.0
    %754 = vmatpush2.msra.mxu0 0.0
    %755 = vmatprep.subr.mxu0 0.0
    %756 = vmatpush2.msra.mxu0 0.0
    %757 = vmatprep.subr.mxu0 0.0
    %758 = vmatpush2.msra.mxu0 0.0
    %759 = vmatprep.subr.mxu0 0.0
    %760 = vmatpush2.msra.mxu0 0.0
    %761 = vmatprep.subr.mxu0 0.0
    %762 = vmatpush2.msra.mxu0 0.0
    %763 = vmatprep.mubr.f32.mxu0 0.0
    %v764 = vand.u32 %v598, 4294901760
    %765 = vmatmul.mubr.f32.gmra.mxu0 %v764
    %v766 = vpop.f32.mrf.mxu0
    %v767 = vadd.f32 %v676, %v766
    %v768 = vpop.f32.mrf.mxu0
    %769 = vdwg.mxu0
    %770 = vmatprep.subr.mxu0 0.0
    %771 = vmatpush1.msra.mxu0 0.0
    %772 = vmatprep.subr.mxu0 0.0
    %773 = vmatpush1.msra.mxu0 0.0
    %774 = vmatprep.subr.mxu0 0.0
    %775 = vmatpush1.msra.mxu0 0.0
    %776 = vmatprep.subr.mxu0 0.0
    %777 = vmatpush1.msra.mxu0 0.0
    %778 = vmatprep.subr.mxu0 0.0
    %779 = vmatpush1.msra.mxu0 0.0
    %780 = vmatprep.subr.mxu0 0.0
    %781 = vmatpush1.msra.mxu0 0.0
    %782 = vmatprep.subr.mxu0 0.0
    %783 = vmatpush1.msra.mxu0 0.0
    %784 = vmatprep.subr.mxu0 0.0
    %785 = vmatpush1.msra.mxu0 0.0
    %786 = vmatprep.subr.mxu0 0.0
    %787 = vmatpush1.msra.mxu0 0.0
    %788 = vmatprep.subr.mxu0 0.0
    %789 = vmatpush1.msra.mxu0 0.0
    %790 = vmatprep.subr.mxu0 0.0
    %791 = vmatpush1.msra.mxu0 0.0
    %792 = vmatprep.subr.mxu0 0.0
    %793 = vmatpush1.msra.mxu0 0.0
    %794 = vmatprep.subr.mxu0 0.0
    %v795 = vand.u32 %v588, 4294901760
    %v796 = vsub.f32 %v588, %v795
    %797 = vmatpush1.msra.mxu0 %v796
    %798 = vmatprep.subr.mxu0 0.0
    %v799 = vand.u32 %v587, 4294901760
    %v800 = vsub.f32 %v587, %v799
    %801 = vmatpush1.msra.mxu0 %v800
    %802 = vmatprep.subr.mxu0 0.0
    %v803 = vand.u32 %v586, 4294901760
    %v804 = vsub.f32 %v586, %v803
    %805 = vmatpush1.msra.mxu0 %v804
    %806 = vmatprep.subr.mxu0 0.0
    %v807 = vand.u32 %v585, 4294901760
    %v808 = vsub.f32 %v585, %v807
    %809 = vmatpush1.msra.mxu0 %v808
    %810 = vmatprep.subr.mxu0 0.0
    %811 = vmatpush2.msra.mxu0 0.0
    %812 = vmatprep.subr.mxu0 0.0
    %813 = vmatpush2.msra.mxu0 0.0
    %814 = vmatprep.subr.mxu0 0.0
    %815 = vmatpush2.msra.mxu0 0.0
    %816 = vmatprep.subr.mxu0 0.0
    %817 = vmatpush2.msra.mxu0 0.0
    %818 = vmatprep.subr.mxu0 0.0
    %819 = vmatpush2.msra.mxu0 0.0
    %820 = vmatprep.subr.mxu0 0.0
    %821 = vmatpush2.msra.mxu0 0.0
    %822 = vmatprep.subr.mxu0 0.0
    %823 = vmatpush2.msra.mxu0 0.0
    %824 = vmatprep.subr.mxu0 0.0
    %825 = vmatpush2.msra.mxu0 0.0
    %826 = vmatprep.subr.mxu0 0.0
    %827 = vmatpush2.msra.mxu0 0.0
    %828 = vmatprep.subr.mxu0 0.0
    %829 = vmatpush2.msra.mxu0 0.0
    %830 = vmatprep.subr.mxu0 0.0
    %831 = vmatpush2.msra.mxu0 0.0
    %832 = vmatprep.subr.mxu0 0.0
    %833 = vmatpush2.msra.mxu0 0.0
    %834 = vmatprep.subr.mxu0 0.0
    %835 = vmatpush2.msra.mxu0 0.0
    %836 = vmatprep.subr.mxu0 0.0
    %837 = vmatpush2.msra.mxu0 0.0
    %838 = vmatprep.subr.mxu0 0.0
    %839 = vmatpush2.msra.mxu0 0.0
    %840 = vmatprep.subr.mxu0 0.0
    %841 = vmatpush2.msra.mxu0 0.0
    %842 = vmatprep.mubr.f32.mxu0 0.0
    %v843 = vand.u32 %v598, 4294901760
    %v844 = vsub.f32 %v598, %v843
    %845 = vmatmul.mubr.f32.gmra.mxu0 %v844
    %v846 = vpop.f32.mrf.mxu0
    %v847 = vadd.f32 %v767, %v846
    %v848 = vpop.f32.mrf.mxu0
    %849 = vdwg.mxu0
    %850 = vmatprep.subr.mxu0 0.0
    %851 = vmatpush1.msra.mxu0 0.0
    %852 = vmatprep.subr.mxu0 0.0
    %853 = vmatpush1.msra.mxu0 0.0
    %854 = vmatprep.subr.mxu0 0.0
    %855 = vmatpush1.msra.mxu0 0.0
    %856 = vmatprep.subr.mxu0 0.0
    %857 = vmatpush1.msra.mxu0 0.0
    %858 = vmatprep.subr.mxu0 0.0
    %859 = vmatpush1.msra.mxu0 0.0
    %860 = vmatprep.subr.mxu0 0.0
    %861 = vmatpush1.msra.mxu0 0.0
    %862 = vmatprep.subr.mxu0 0.0
    %863 = vmatpush1.msra.mxu0 0.0
    %864 = vmatprep.subr.mxu0 0.0
    %865 = vmatpush1.msra.mxu0 0.0
    %866 = vmatprep.subr.mxu0 0.0
    %867 = vmatpush1.msra.mxu0 0.0
    %868 = vmatprep.subr.mxu0 0.0
    %869 = vmatpush1.msra.mxu0 0.0
    %870 = vmatprep.subr.mxu0 0.0
    %871 = vmatpush1.msra.mxu0 0.0
    %872 = vmatprep.subr.mxu0 0.0
    %873 = vmatpush1.msra.mxu0 0.0
    %874 = vmatprep.subr.mxu0 0.0
    %v875 = vand.u32 %v588, 4294901760
    %876 = vmatpush1.msra.mxu0 %v875
    %877 = vmatprep.subr.mxu0 0.0
    %v878 = vand.u32 %v587, 4294901760
    %879 = vmatpush1.msra.mxu0 %v878
    %880 = vmatprep.subr.mxu0 0.0
    %v881 = vand.u32 %v586, 4294901760
    %882 = vmatpush1.msra.mxu0 %v881
    %883 = vmatprep.subr.mxu0 0.0
    %v884 = vand.u32 %v585, 4294901760
    %885 = vmatpush1.msra.mxu0 %v884
    %886 = vmatprep.subr.mxu0 0.0
    %887 = vmatpush2.msra.mxu0 0.0
    %888 = vmatprep.subr.mxu0 0.0
    %889 = vmatpush2.msra.mxu0 0.0
    %890 = vmatprep.subr.mxu0 0.0
    %891 = vmatpush2.msra.mxu0 0.0
    %892 = vmatprep.subr.mxu0 0.0
    %893 = vmatpush2.msra.mxu0 0.0
    %894 = vmatprep.subr.mxu0 0.0
    %895 = vmatpush2.msra.mxu0 0.0
    %896 = vmatprep.subr.mxu0 0.0
    %897 = vmatpush2.msra.mxu0 0.0
    %898 = vmatprep.subr.mxu0 0.0
    %899 = vmatpush2.msra.mxu0 0.0
    %900 = vmatprep.subr.mxu0 0.0
    %901 = vmatpush2.msra.mxu0 0.0
    %902 = vmatprep.subr.mxu0 0.0
    %903 = vmatpush2.msra.mxu0 0.0
    %904 = vmatprep.subr.mxu0 0.0
    %905 = vmatpush2.msra.mxu0 0.0
    %906 = vmatprep.subr.mxu0 0.0
    %907 = vmatpush2.msra.mxu0 0.0
    %908 = vmatprep.subr.mxu0 0.0
    %909 = vmatpush2.msra.mxu0 0.0
    %910 = vmatprep.subr.mxu0 0.0
    %911 = vmatpush2.msra.mxu0 0.0
    %912 = vmatprep.subr.mxu0 0.0
    %913 = vmatpush2.msra.mxu0 0.0
    %914 = vmatprep.subr.mxu0 0.0
    %915 = vmatpush2.msra.mxu0 0.0
    %916 = vmatprep.subr.mxu0 0.0
    %917 = vmatpush2.msra.mxu0 0.0
    %918 = vmatprep.mubr.f32.mxu0 0.0
    %v919 = vand.u32 %v598, 4294901760
    %v920 = vsub.f32 %v598, %v919
    %v921 = vand.u32 %v920, 4294901760
    %922 = vmatmul.mubr.f32.gmra.mxu0 %v921
    %v923 = vpop.f32.mrf.mxu0
    %v924 = vadd.f32 %v847, %v923
    %v925 = vpop.f32.mrf.mxu0
    %926 = vdwg.mxu0
    %927 = vmatprep.subr.mxu0 0.0
    %928 = vmatpush1.msra.mxu0 0.0
    %929 = vmatprep.subr.mxu0 0.0
    %930 = vmatpush1.msra.mxu0 0.0
    %931 = vmatprep.subr.mxu0 0.0
    %932 = vmatpush1.msra.mxu0 0.0
    %933 = vmatprep.subr.mxu0 0.0
    %934 = vmatpush1.msra.mxu0 0.0
    %935 = vmatprep.subr.mxu0 0.0
    %936 = vmatpush1.msra.mxu0 0.0
    %937 = vmatprep.subr.mxu0 0.0
    %938 = vmatpush1.msra.mxu0 0.0
    %939 = vmatprep.subr.mxu0 0.0
    %940 = vmatpush1.msra.mxu0 0.0
    %941 = vmatprep.subr.mxu0 0.0
    %942 = vmatpush1.msra.mxu0 0.0
    %943 = vmatprep.subr.mxu0 0.0
    %944 = vmatpush1.msra.mxu0 0.0
    %945 = vmatprep.subr.mxu0 0.0
    %946 = vmatpush1.msra.mxu0 0.0
    %947 = vmatprep.subr.mxu0 0.0
    %948 = vmatpush1.msra.mxu0 0.0
    %949 = vmatprep.subr.mxu0 0.0
    %950 = vmatpush1.msra.mxu0 0.0
    %951 = vmatprep.subr.mxu0 0.0
    %v952 = vand.u32 %v588, 4294901760
    %v953 = vsub.f32 %v588, %v952
    %v954 = vand.u32 %v953, 4294901760
    %955 = vmatpush1.msra.mxu0 %v954
    %956 = vmatprep.subr.mxu0 0.0
    %v957 = vand.u32 %v587, 4294901760
    %v958 = vsub.f32 %v587, %v957
    %v959 = vand.u32 %v958, 4294901760
    %960 = vmatpush1.msra.mxu0 %v959
    %961 = vmatprep.subr.mxu0 0.0
    %v962 = vand.u32 %v586, 4294901760
    %v963 = vsub.f32 %v586, %v962
    %v964 = vand.u32 %v963, 4294901760
    %965 = vmatpush1.msra.mxu0 %v964
    %966 = vmatprep.subr.mxu0 0.0
    %v967 = vand.u32 %v585, 4294901760
    %v968 = vsub.f32 %v585, %v967
    %v969 = vand.u32 %v968, 4294901760
    %970 = vmatpush1.msra.mxu0 %v969
    %971 = vmatprep.subr.mxu0 0.0
    %972 = vmatpush2.msra.mxu0 0.0
    %973 = vmatprep.subr.mxu0 0.0
    %974 = vmatpush2.msra.mxu0 0.0
    %975 = vmatprep.subr.mxu0 0.0
    %976 = vmatpush2.msra.mxu0 0.0
    %977 = vmatprep.subr.mxu0 0.0
    %978 = vmatpush2.msra.mxu0 0.0
    %979 = vmatprep.subr.mxu0 0.0
    %980 = vmatpush2.msra.mxu0 0.0
    %981 = vmatprep.subr.mxu0 0.0
    %982 = vmatpush2.msra.mxu0 0.0
    %983 = vmatprep.subr.mxu0 0.0
    %984 = vmatpush2.msra.mxu0 0.0
    %985 = vmatprep.subr.mxu0 0.0
    %986 = vmatpush2.msra.mxu0 0.0
    %987 = vmatprep.subr.mxu0 0.0
    %988 = vmatpush2.msra.mxu0 0.0
    %989 = vmatprep.subr.mxu0 0.0
    %990 = vmatpush2.msra.mxu0 0.0
    %991 = vmatprep.subr.mxu0 0.0
    %992 = vmatpush2.msra.mxu0 0.0
    %993 = vmatprep.subr.mxu0 0.0
    %994 = vmatpush2.msra.mxu0 0.0
    %995 = vmatprep.subr.mxu0 0.0
    %996 = vmatpush2.msra.mxu0 0.0
    %997 = vmatprep.subr.mxu0 0.0
    %998 = vmatpush2.msra.mxu0 0.0
    %999 = vmatprep.subr.mxu0 0.0
    %1000 = vmatpush2.msra.mxu0 0.0
    %1001 = vmatprep.subr.mxu0 0.0
    %1002 = vmatpush2.msra.mxu0 0.0
    %1003 = vmatprep.mubr.f32.mxu0 0.0
    %v1004 = vand.u32 %v598, 4294901760
    %1005 = vmatmul.mubr.f32.gmra.mxu0 %v1004
    %v1006 = vpop.f32.mrf.mxu0
    %v1007 = vadd.f32 %v924, %v1006
    %v1008 = vpop.f32.mrf.mxu0
    %1009 = vdwg.mxu0
    %1010 = vmatprep.subr.mxu0 0.0
    %1011 = vmatpush1.msra.mxu0 0.0
    %1012 = vmatprep.subr.mxu0 0.0
    %1013 = vmatpush1.msra.mxu0 0.0
    %1014 = vmatprep.subr.mxu0 0.0
    %1015 = vmatpush1.msra.mxu0 0.0
    %1016 = vmatprep.subr.mxu0 0.0
    %1017 = vmatpush1.msra.mxu0 0.0
    %1018 = vmatprep.subr.mxu0 0.0
    %1019 = vmatpush1.msra.mxu0 0.0
    %1020 = vmatprep.subr.mxu0 0.0
    %1021 = vmatpush1.msra.mxu0 0.0
    %1022 = vmatprep.subr.mxu0 0.0
    %1023 = vmatpush1.msra.mxu0 0.0
    %1024 = vmatprep.subr.mxu0 0.0
    %1025 = vmatpush1.msra.mxu0 0.0
    %1026 = vmatprep.subr.mxu0 0.0
    %1027 = vmatpush1.msra.mxu0 0.0
    %1028 = vmatprep.subr.mxu0 0.0
    %1029 = vmatpush1.msra.mxu0 0.0
    %1030 = vmatprep.subr.mxu0 0.0
    %1031 = vmatpush1.msra.mxu0 0.0
    %1032 = vmatprep.subr.mxu0 0.0
    %1033 = vmatpush1.msra.mxu0 0.0
    %1034 = vmatprep.subr.mxu0 0.0
    %v1035 = vand.u32 %v588, 4294901760
    %1036 = vmatpush1.msra.mxu0 %v1035
    %1037 = vmatprep.subr.mxu0 0.0
    %v1038 = vand.u32 %v587, 4294901760
    %1039 = vmatpush1.msra.mxu0 %v1038
    %1040 = vmatprep.subr.mxu0 0.0
    %v1041 = vand.u32 %v586, 4294901760
    %1042 = vmatpush1.msra.mxu0 %v1041
    %1043 = vmatprep.subr.mxu0 0.0
    %v1044 = vand.u32 %v585, 4294901760
    %1045 = vmatpush1.msra.mxu0 %v1044
    %1046 = vmatprep.subr.mxu0 0.0
    %1047 = vmatpush2.msra.mxu0 0.0
    %1048 = vmatprep.subr.mxu0 0.0
    %1049 = vmatpush2.msra.mxu0 0.0
    %1050 = vmatprep.subr.mxu0 0.0
    %1051 = vmatpush2.msra.mxu0 0.0
    %1052 = vmatprep.subr.mxu0 0.0
    %1053 = vmatpush2.msra.mxu0 0.0
    %1054 = vmatprep.subr.mxu0 0.0
    %1055 = vmatpush2.msra.mxu0 0.0
    %1056 = vmatprep.subr.mxu0 0.0
    %1057 = vmatpush2.msra.mxu0 0.0
    %1058 = vmatprep.subr.mxu0 0.0
    %1059 = vmatpush2.msra.mxu0 0.0
    %1060 = vmatprep.subr.mxu0 0.0
    %1061 = vmatpush2.msra.mxu0 0.0
    %1062 = vmatprep.subr.mxu0 0.0
    %1063 = vmatpush2.msra.mxu0 0.0
    %1064 = vmatprep.subr.mxu0 0.0
    %1065 = vmatpush2.msra.mxu0 0.0
    %1066 = vmatprep.subr.mxu0 0.0
    %1067 = vmatpush2.msra.mxu0 0.0
    %1068 = vmatprep.subr.mxu0 0.0
    %1069 = vmatpush2.msra.mxu0 0.0
    %1070 = vmatprep.subr.mxu0 0.0
    %1071 = vmatpush2.msra.mxu0 0.0
    %1072 = vmatprep.subr.mxu0 0.0
    %1073 = vmatpush2.msra.mxu0 0.0
    %1074 = vmatprep.subr.mxu0 0.0
    %1075 = vmatpush2.msra.mxu0 0.0
    %1076 = vmatprep.subr.mxu0 0.0
    %1077 = vmatpush2.msra.mxu0 0.0
    %1078 = vmatprep.mubr.f32.mxu0 0.0
    %v1079 = vand.u32 %v598, 4294901760
    %1080 = vmatmul.mubr.f32.gmra.mxu0 %v1079
    %v1081 = vpop.f32.mrf.mxu0
    %v1082 = vadd.f32 %v1007, %v1081
    %v1083 = vpop.f32.mrf.mxu0
    %1084 = vdwg.mxu0
    %1085 = vxpose.xlu0.b32.start [1/16] %v1082, 128
    %1086 = vxpose.xlu0.b32.cont [2/16] 0.0, 128
    %1087 = vxpose.xlu0.b32.cont [3/16] 0.0, 128
    %1088 = vxpose.xlu0.b32.cont [4/16] 0.0, 128
    %1089 = vxpose.xlu0.b32.cont [5/16] 0.0, 128
    %1090 = vxpose.xlu0.b32.cont [6/16] 0.0, 128
    %1091 = vxpose.xlu0.b32.cont [7/16] 0.0, 128
    %1092 = vxpose.xlu0.b32.cont [8/16] 0.0, 128
    %1093 = vxpose.xlu0.b32.cont [9/16] 0.0, 128
    %1094 = vxpose.xlu0.b32.cont [10/16] 0.0, 128
    %1095 = vxpose.xlu0.b32.cont [11/16] 0.0, 128
    %1096 = vxpose.xlu0.b32.cont [12/16] 0.0, 128
    %1097 = vxpose.xlu0.b32.cont [13/16] 0.0, 128
    %1098 = vxpose.xlu0.b32.cont [14/16] 0.0, 128
    %1099 = vxpose.xlu0.b32.cont [15/16] 0.0, 128
    %1100 = vxpose.xlu0.b32.end [16/16] 0.0, 128
    %v1101 = vpop.trf.xlu0
    %v1102 = vpop.trf.xlu0
    %v1103 = vpop.trf.xlu0
    %v1104 = vpop.trf.xlu0
    %v1105 = vpop.trf.xlu0
    %v1106 = vpop.trf.xlu0
    %v1107 = vpop.trf.xlu0
    %v1108 = vpop.trf.xlu0
    %v1109 = vpop.trf.xlu0
    %v1110 = vpop.trf.xlu0
    %v1111 = vpop.trf.xlu0
    %v1112 = vpop.trf.xlu0
    %v1113 = vpop.trf.xlu0
    %v1114 = vpop.trf.xlu0
    %v1115 = vpop.trf.xlu0
    %v1116 = vpop.trf.xlu0
    %vm1117 = vcmask 64512
    %v1118 = vsel %vm1117, %v1101, -inf
    %v1119 = vsel %vm1117, %v1102, -inf
    %v1120 = vsel %vm1117, %v1103, -inf
    %v1121 = vsel %vm1117, %v1104, -inf
    %v1122 = vsel %vm1117, %v1105, -inf
    %v1123 = vmax.f32 %v1118, %v1122
    %v1124 = vsel %vm1117, %v1106, -inf
    %v1125 = vmax.f32 %v1119, %v1124
    %v1126 = vsel %vm1117, %v1107, -inf
    %v1127 = vmax.f32 %v1120, %v1126
    %v1128 = vsel %vm1117, %v1108, -inf
    %v1129 = vmax.f32 %v1121, %v1128
    %v1130 = vsel %vm1117, %v1109, -inf
    %v1131 = vmax.f32 %v1123, %v1130
    %v1132 = vsel %vm1117, %v1110, -inf
    %v1133 = vmax.f32 %v1125, %v1132
    %v1134 = vsel %vm1117, %v1111, -inf
    %v1135 = vmax.f32 %v1127, %v1134
    %v1136 = vsel %vm1117, %v1112, -inf
    %v1137 = vmax.f32 %v1129, %v1136
    %v1138 = vsel %vm1117, %v1113, -inf
    %v1139 = vmax.f32 %v1131, %v1138
    %v1140 = vsel %vm1117, %v1114, -inf
    %v1141 = vmax.f32 %v1133, %v1140
    %v1142 = vsel %vm1117, %v1115, -inf
    %v1143 = vmax.f32 %v1135, %v1142
    %v1144 = vsel %vm1117, %v1116, -inf
    %v1145 = vmax.f32 %v1137, %v1144
    %v1146 = vmax.f32 %v1139, %v1141
    %v1147 = vmax.f32 %v1143, %v1145
    %v1148 = vmax.f32 %v1146, %v1147
    %v1149 = vrot.slane %v1148, 4
    %v1150 = vmax.f32 %v1148, %v1149
    %v1151 = vrot.slane %v1150, 2
    %v1152 = vmax.f32 %v1150, %v1151
    %v1153 = vrot.slane %v1152, 1
    %v1154 = vmax.f32 %v1152, %v1153
    %v1155 = vsub.f32 %v1101, %v1154
    %v1156 = vsub.f32 %v1102, %v1154
    %v1157 = vsub.f32 %v1103, %v1154
    %v1158 = vsub.f32 %v1104, %v1154
    %v1159 = vsub.f32 %v1105, %v1154
    %v1160 = vsub.f32 %v1106, %v1154
    %v1161 = vsub.f32 %v1107, %v1154
    %v1162 = vsub.f32 %v1108, %v1154
    %v1163 = vsub.f32 %v1109, %v1154
    %v1164 = vsub.f32 %v1110, %v1154
    %v1165 = vsub.f32 %v1111, %v1154
    %v1166 = vsub.f32 %v1112, %v1154
    %v1167 = vsub.f32 %v1113, %v1154
    %v1168 = vsub.f32 %v1114, %v1154
    %v1169 = vsub.f32 %v1115, %v1154
    %v1170 = vsub.f32 %v1116, %v1154
    %v1171 = vmul.f32 %v1155, 1.442695
    %v1172 = vpow.pop %v1171
    %v1173 = vmul.f32 %v1156, 1.442695
    %v1174 = vpow.pop %v1173
    %v1175 = vmul.f32 %v1157, 1.442695
    %v1176 = vpow.pop %v1175
    %v1177 = vmul.f32 %v1158, 1.442695
    %v1178 = vpow.pop %v1177
    %v1179 = vmul.f32 %v1159, 1.442695
    %v1180 = vpow.pop %v1179
    %v1181 = vmul.f32 %v1160, 1.442695
    %v1182 = vpow.pop %v1181
    %v1183 = vmul.f32 %v1161, 1.442695
    %v1184 = vpow.pop %v1183
    %v1185 = vmul.f32 %v1162, 1.442695
    %v1186 = vpow.pop %v1185
    %v1187 = vmul.f32 %v1163, 1.442695
    %v1188 = vpow.pop %v1187
    %v1189 = vmul.f32 %v1164, 1.442695
    %v1190 = vpow.pop %v1189
    %v1191 = vmul.f32 %v1165, 1.442695
    %v1192 = vpow.pop %v1191
    %v1193 = vmul.f32 %v1166, 1.442695
    %v1194 = vpow.pop %v1193
    %v1195 = vmul.f32 %v1167, 1.442695
    %v1196 = vpow.pop %v1195
    %v1197 = vmul.f32 %v1168, 1.442695
    %v1198 = vpow.pop %v1197
    %v1199 = vmul.f32 %v1169, 1.442695
    %v1200 = vpow.pop %v1199
    %v1201 = vmul.f32 %v1170, 1.442695
    %v1202 = vpow.pop %v1201
    %v1203 = vsel %vm1117, %v1172, 0.0
    %v1204 = vsel %vm1117, %v1174, 0.0
    %v1205 = vadd.f32 %v1203, %v1204
    %v1206 = vsel %vm1117, %v1176, 0.0
    %v1207 = vadd.f32 %v1205, %v1206
    %v1208 = vsel %vm1117, %v1178, 0.0
    %v1209 = vadd.f32 %v1207, %v1208
    %v1210 = vsel %vm1117, %v1180, 0.0
    %v1211 = vadd.f32 %v1209, %v1210
    %v1212 = vsel %vm1117, %v1182, 0.0
    %v1213 = vadd.f32 %v1211, %v1212
    %v1214 = vsel %vm1117, %v1184, 0.0
    %v1215 = vadd.f32 %v1213, %v1214
    %v1216 = vsel %vm1117, %v1186, 0.0
    %v1217 = vadd.f32 %v1215, %v1216
    %v1218 = vsel %vm1117, %v1188, 0.0
    %v1219 = vadd.f32 %v1217, %v1218
    %v1220 = vsel %vm1117, %v1190, 0.0
    %v1221 = vadd.f32 %v1219, %v1220
    %v1222 = vsel %vm1117, %v1192, 0.0
    %v1223 = vadd.f32 %v1221, %v1222
    %v1224 = vsel %vm1117, %v1194, 0.0
    %v1225 = vadd.f32 %v1223, %v1224
    %v1226 = vsel %vm1117, %v1196, 0.0
    %v1227 = vadd.f32 %v1225, %v1226
    %v1228 = vsel %vm1117, %v1198, 0.0
    %v1229 = vadd.f32 %v1227, %v1228
    %v1230 = vsel %vm1117, %v1200, 0.0
    %v1231 = vadd.f32 %v1229, %v1230
    %v1232 = vsel %vm1117, %v1202, 0.0
    %v1233 = vadd.f32 %v1231, %v1232
    %v1234 = vrot.slane %v1233, 4
    %v1235 = vadd.f32 %v1233, %v1234
    %v1236 = vrot.slane %v1235, 2
    %v1237 = vadd.f32 %v1235, %v1236
    %v1238 = vrot.slane %v1237, 1
    %v1239 = vadd.f32 %v1237, %v1238
    %v1240 = vlog2.pop %v1239
    %v1241 = vmul.f32 %v1240, 0.6931472
    %v1242 = vadd.f32 %v1154, %v1241
    %v1243 = vlaneseq
    %v1244 = vshrl.u32 %v1243, 7
    %v1245 = vadd.s32 %v1244, 8
    %v1246 = vadd.s32 %v1244, 16
    %v1247 = vadd.s32 %v1244, 24
    %v1248 = vadd.s32 %v1244, 32
    %v1249 = vadd.s32 %v1244, 40
    %v1250 = vadd.s32 %v1244, 48
    %v1251 = vadd.s32 %v1244, 56
    %v1252 = vadd.s32 %v1244, 64
    %v1253 = vadd.s32 %v1244, 72
    %v1254 = vadd.s32 %v1244, 80
    %v1255 = vadd.s32 %v1244, 88
    %v1256 = vadd.s32 %v1244, 96
    %v1257 = vadd.s32 %v1244, 104
    %v1258 = vadd.s32 %v1244, 112
    %v1259 = vadd.s32 %v1244, 120
    %v1260 = vld [vmem:[%s5] sm:$0xff]
    %v1261 = vld [vmem:[%s5 + $0x8] sm:$0xff]
    %v1262 = vld [vmem:[%s5 + $0x10] sm:$0xff]
    %v1263 = vld [vmem:[%s5 + $0x18] sm:$0xff]
    %v1264 = vld [vmem:[%s5 + $0x20] sm:$0xff]
    %v1265 = vld [vmem:[%s5 + $0x28] sm:$0xff]
    %v1266 = vld [vmem:[%s5 + $0x30] sm:$0xff]
    %v1267 = vld [vmem:[%s5 + $0x38] sm:$0xff]
    %v1268 = vld [vmem:[%s5 + $0x40] sm:$0xff]
    %v1269 = vld [vmem:[%s5 + $0x48] sm:$0xff]
    %v1270 = vld [vmem:[%s5 + $0x50] sm:$0xff]
    %v1271 = vld [vmem:[%s5 + $0x58] sm:$0xff]
    %v1272 = vld [vmem:[%s5 + $0x60] sm:$0xff]
    %v1273 = vld [vmem:[%s5 + $0x68] sm:$0xff]
    %v1274 = vld [vmem:[%s5 + $0x70] sm:$0xff]
    %v1275 = vld [vmem:[%s5 + $0x78] sm:$0xff]
    %v1276 = vadd.f32 %v1101, %v1260
    %v1277 = vadd.f32 %v1102, %v1261
    %v1278 = vadd.f32 %v1103, %v1262
    %v1279 = vadd.f32 %v1104, %v1263
    %v1280 = vadd.f32 %v1105, %v1264
    %v1281 = vadd.f32 %v1106, %v1265
    %v1282 = vadd.f32 %v1107, %v1266
    %v1283 = vadd.f32 %v1108, %v1267
    %v1284 = vadd.f32 %v1109, %v1268
    %v1285 = vadd.f32 %v1110, %v1269
    %v1286 = vadd.f32 %v1111, %v1270
    %v1287 = vadd.f32 %v1112, %v1271
    %v1288 = vadd.f32 %v1113, %v1272
    %v1289 = vadd.f32 %v1114, %v1273
    %v1290 = vadd.f32 %v1115, %v1274
    %v1291 = vadd.f32 %v1116, %v1275
    %v1292 = vsel %vm1117, %v1276, -inf
    %v1293 = vsel %vm1117, %v1277, -inf
    %v1294 = vsel %vm1117, %v1278, -inf
    %v1295 = vsel %vm1117, %v1279, -inf
    %v1296 = vsel %vm1117, %v1280, -inf
    %v1297 = vmax.f32 %v1292, %v1296
    %v1298 = vsel %vm1117, %v1281, -inf
    %v1299 = vmax.f32 %v1293, %v1298
    %v1300 = vsel %vm1117, %v1282, -inf
    %v1301 = vmax.f32 %v1294, %v1300
    %v1302 = vsel %vm1117, %v1283, -inf
    %v1303 = vmax.f32 %v1295, %v1302
    %v1304 = vsel %vm1117, %v1284, -inf
    %v1305 = vmax.f32 %v1297, %v1304
    %v1306 = vsel %vm1117, %v1285, -inf
    %v1307 = vmax.f32 %v1299, %v1306
    %v1308 = vsel %vm1117, %v1286, -inf
    %v1309 = vmax.f32 %v1301, %v1308
    %v1310 = vsel %vm1117, %v1287, -inf
    %v1311 = vmax.f32 %v1303, %v1310
    %v1312 = vsel %vm1117, %v1288, -inf
    %v1313 = vmax.f32 %v1305, %v1312
    %v1314 = vsel %vm1117, %v1289, -inf
    %v1315 = vmax.f32 %v1307, %v1314
    %v1316 = vsel %vm1117, %v1290, -inf
    %v1317 = vmax.f32 %v1309, %v1316
    %v1318 = vsel %vm1117, %v1291, -inf
    %v1319 = vmax.f32 %v1311, %v1318
    %v1320 = vmax.f32 %v1313, %v1315
    %v1321 = vmax.f32 %v1317, %v1319
    %v1322 = vmax.f32 %v1320, %v1321
    %v1323 = vrot.slane %v1322, 4
    %v1324 = vmax.f32 %v1322, %v1323
    %v1325 = vrot.slane %v1324, 2
    %v1326 = vmax.f32 %v1324, %v1325
    %v1327 = vrot.slane %v1326, 1
    %v1328 = vmax.f32 %v1326, %v1327
    %vm1329 = vcmp.eq.f32.partialorder %v1276, %v1328
    %vm1330 = vcmp.eq.f32.partialorder %v1277, %v1328
    %vm1331 = vcmp.eq.f32.partialorder %v1278, %v1328
    %vm1332 = vcmp.eq.f32.partialorder %v1279, %v1328
    %vm1333 = vcmp.eq.f32.partialorder %v1280, %v1328
    %vm1334 = vcmp.eq.f32.partialorder %v1281, %v1328
    %vm1335 = vcmp.eq.f32.partialorder %v1282, %v1328
    %vm1336 = vcmp.eq.f32.partialorder %v1283, %v1328
    %vm1337 = vcmp.eq.f32.partialorder %v1284, %v1328
    %vm1338 = vcmp.eq.f32.partialorder %v1285, %v1328
    %vm1339 = vcmp.eq.f32.partialorder %v1286, %v1328
    %vm1340 = vcmp.eq.f32.partialorder %v1287, %v1328
    %vm1341 = vcmp.eq.f32.partialorder %v1288, %v1328
    %vm1342 = vcmp.eq.f32.partialorder %v1289, %v1328
    %vm1343 = vcmp.eq.f32.partialorder %v1290, %v1328
    %vm1344 = vcmp.eq.f32.partialorder %v1291, %v1328
    %v1345 = vsel %vm1329, %v1244, 128
    %v1346 = vsel %vm1330, %v1245, 128
    %v1347 = vsel %vm1331, %v1246, 128
    %v1348 = vsel %vm1332, %v1247, 128
    %v1349 = vsel %vm1333, %v1248, 128
    %v1350 = vsel %vm1334, %v1249, 128
    %v1351 = vsel %vm1335, %v1250, 128
    %v1352 = vsel %vm1336, %v1251, 128
    %v1353 = vsel %vm1337, %v1252, 128
    %v1354 = vsel %vm1338, %v1253, 128
    %v1355 = vsel %vm1339, %v1254, 128
    %v1356 = vsel %vm1340, %v1255, 128
    %v1357 = vsel %vm1341, %v1256, 128
    %v1358 = vsel %vm1342, %v1257, 128
    %v1359 = vsel %vm1343, %v1258, 128
    %v1360 = vsel %vm1344, %v1259, 128
    %v1361 = vsel %vm1117, %v1345, 2147483647
    %v1362 = vsel %vm1117, %v1346, 2147483647
    %v1363 = vsel %vm1117, %v1347, 2147483647
    %v1364 = vsel %vm1117, %v1348, 2147483647
    %v1365 = vsel %vm1117, %v1349, 2147483647
    %vm1366 = vcmp.lt.s32.totalorder %v1361, %v1365
    %v1367 = vsel %vm1366, %v1361, %v1365
    %v1368 = vsel %vm1117, %v1350, 2147483647
    %vm1369 = vcmp.lt.s32.totalorder %v1362, %v1368
    %v1370 = vsel %vm1369, %v1362, %v1368
    %v1371 = vsel %vm1117, %v1351, 2147483647
    %vm1372 = vcmp.lt.s32.totalorder %v1363, %v1371
    %v1373 = vsel %vm1372, %v1363, %v1371
    %v1374 = vsel %vm1117, %v1352, 2147483647
    %vm1375 = vcmp.lt.s32.totalorder %v1364, %v1374
    %v1376 = vsel %vm1375, %v1364, %v1374
    %v1377 = vsel %vm1117, %v1353, 2147483647
    %vm1378 = vcmp.lt.s32.totalorder %v1367, %v1377
    %v1379 = vsel %vm1378, %v1367, %v1377
    %v1380 = vsel %vm1117, %v1354, 2147483647
    %vm1381 = vcmp.lt.s32.totalorder %v1370, %v1380
    %v1382 = vsel %vm1381, %v1370, %v1380
    %v1383 = vsel %vm1117, %v1355, 2147483647
    %vm1384 = vcmp.lt.s32.totalorder %v1373, %v1383
    %v1385 = vsel %vm1384, %v1373, %v1383
    %v1386 = vsel %vm1117, %v1356, 2147483647
    %vm1387 = vcmp.lt.s32.totalorder %v1376, %v1386
    %v1388 = vsel %vm1387, %v1376, %v1386
    %v1389 = vsel %vm1117, %v1357, 2147483647
    %vm1390 = vcmp.lt.s32.totalorder %v1379, %v1389
    %v1391 = vsel %vm1390, %v1379, %v1389
    %v1392 = vsel %vm1117, %v1358, 2147483647
    %vm1393 = vcmp.lt.s32.totalorder %v1382, %v1392
    %v1394 = vsel %vm1393, %v1382, %v1392
    %v1395 = vsel %vm1117, %v1359, 2147483647
    %vm1396 = vcmp.lt.s32.totalorder %v1385, %v1395
    %v1397 = vsel %vm1396, %v1385, %v1395
    %v1398 = vsel %vm1117, %v1360, 2147483647
    %vm1399 = vcmp.lt.s32.totalorder %v1388, %v1398
    %v1400 = vsel %vm1399, %v1388, %v1398
    %vm1401 = vcmp.lt.s32.totalorder %v1391, %v1394
    %v1402 = vsel %vm1401, %v1391, %v1394
    %vm1403 = vcmp.lt.s32.totalorder %v1397, %v1400
    %v1404 = vsel %vm1403, %v1397, %v1400
    %vm1405 = vcmp.lt.s32.totalorder %v1402, %v1404
    %v1406 = vsel %vm1405, %v1402, %v1404
    %v1407 = vrot.slane %v1406, 4
    %vm1408 = vcmp.lt.s32.totalorder %v1406, %v1407
    %v1409 = vsel %vm1408, %v1406, %v1407
    %v1410 = vrot.slane %v1409, 2
    %vm1411 = vcmp.lt.s32.totalorder %v1409, %v1410
    %v1412 = vsel %vm1411, %v1409, %v1410
    %v1413 = vrot.slane %v1412, 1
    %vm1414 = vcmp.lt.s32.totalorder %v1412, %v1413
    %v1415 = vsel %vm1414, %v1412, %v1413
    %vm1416 = vcmp.eq.s32.totalorder %v1244, %v1415
    %vm1417 = vcmp.eq.s32.totalorder %v1245, %v1415
    %vm1418 = vcmp.eq.s32.totalorder %v1246, %v1415
    %vm1419 = vcmp.eq.s32.totalorder %v1247, %v1415
    %vm1420 = vcmp.eq.s32.totalorder %v1248, %v1415
    %vm1421 = vcmp.eq.s32.totalorder %v1249, %v1415
    %vm1422 = vcmp.eq.s32.totalorder %v1250, %v1415
    %vm1423 = vcmp.eq.s32.totalorder %v1251, %v1415
    %vm1424 = vcmp.eq.s32.totalorder %v1252, %v1415
    %vm1425 = vcmp.eq.s32.totalorder %v1253, %v1415
    %vm1426 = vcmp.eq.s32.totalorder %v1254, %v1415
    %vm1427 = vcmp.eq.s32.totalorder %v1255, %v1415
    %vm1428 = vcmp.eq.s32.totalorder %v1256, %v1415
    %vm1429 = vcmp.eq.s32.totalorder %v1257, %v1415
    %vm1430 = vcmp.eq.s32.totalorder %v1258, %v1415
    %vm1431 = vcmp.eq.s32.totalorder %v1259, %v1415
    %v1432 = vsel %vm1416, %v1101, 0.0
    %v1433 = vsel %vm1417, %v1102, 0.0
    %v1434 = vsel %vm1418, %v1103, 0.0
    %v1435 = vsel %vm1419, %v1104, 0.0
    %v1436 = vsel %vm1420, %v1105, 0.0
    %v1437 = vsel %vm1421, %v1106, 0.0
    %v1438 = vsel %vm1422, %v1107, 0.0
    %v1439 = vsel %vm1423, %v1108, 0.0
    %v1440 = vsel %vm1424, %v1109, 0.0
    %v1441 = vsel %vm1425, %v1110, 0.0
    %v1442 = vsel %vm1426, %v1111, 0.0
    %v1443 = vsel %vm1427, %v1112, 0.0
    %v1444 = vsel %vm1428, %v1113, 0.0
    %v1445 = vsel %vm1429, %v1114, 0.0
    %v1446 = vsel %vm1430, %v1115, 0.0
    %v1447 = vsel %vm1431, %v1116, 0.0
    %v1448 = vsel %vm1117, %v1432, 0.0
    %v1449 = vsel %vm1117, %v1433, 0.0
    %v1450 = vadd.f32 %v1448, %v1449
    %v1451 = vsel %vm1117, %v1434, 0.0
    %v1452 = vadd.f32 %v1450, %v1451
    %v1453 = vsel %vm1117, %v1435, 0.0
    %v1454 = vadd.f32 %v1452, %v1453
    %v1455 = vsel %vm1117, %v1436, 0.0
    %v1456 = vadd.f32 %v1454, %v1455
    %v1457 = vsel %vm1117, %v1437, 0.0
    %v1458 = vadd.f32 %v1456, %v1457
    %v1459 = vsel %vm1117, %v1438, 0.0
    %v1460 = vadd.f32 %v1458, %v1459
    %v1461 = vsel %vm1117, %v1439, 0.0
    %v1462 = vadd.f32 %v1460, %v1461
    %v1463 = vsel %vm1117, %v1440, 0.0
    %v1464 = vadd.f32 %v1462, %v1463
    %v1465 = vsel %vm1117, %v1441, 0.0
    %v1466 = vadd.f32 %v1464, %v1465
    %v1467 = vsel %vm1117, %v1442, 0.0
    %v1468 = vadd.f32 %v1466, %v1467
    %v1469 = vsel %vm1117, %v1443, 0.0
    %v1470 = vadd.f32 %v1468, %v1469
    %v1471 = vsel %vm1117, %v1444, 0.0
    %v1472 = vadd.f32 %v1470, %v1471
    %v1473 = vsel %vm1117, %v1445, 0.0
    %v1474 = vadd.f32 %v1472, %v1473
    %v1475 = vsel %vm1117, %v1446, 0.0
    %v1476 = vadd.f32 %v1474, %v1475
    %v1477 = vsel %vm1117, %v1447, 0.0
    %v1478 = vadd.f32 %v1476, %v1477
    %v1479 = vrot.slane %v1478, 4
    %v1480 = vadd.f32 %v1478, %v1479
    %v1481 = vrot.slane %v1480, 2
    %v1482 = vadd.f32 %v1480, %v1481
    %v1483 = vrot.slane %v1482, 1
    %v1484 = vadd.f32 %v1482, %v1483
    %v1485 = vsub.f32 %v1484, %v1242
    %vm1486 = vcmask 57344
    %1487 = vst.msk [vmem:[#allocation2] sm:$0x1] %vm1486, %v1485
    %1488 = vst.msk [vmem:[#allocation4] sm:$0x1] %vm1486, %v1415
    // Predicated region
    $region26: #{tpu_custom_call.1} parent=1 // pred_check
      _
    $region27: #{tpu_custom_call.1} parent=1 // pred_check_branch
      %1490 = sbr.rel (0) target = $region29
    $region28: #{tpu_custom_call.1} parent=1 // pred_region
      %s1492 = ssub.s32 16, 16
      %1493 = vsyncadd [#allocation3], %s1492
      %s1495 = sshll.u32 [#allocation2], 4
      %s1496 = int_to_ptr.vmem [resolvable:$true] %s1495
      %1498 = dma.vmem_to_hbm [thread:$0]  %s1496, 16, %s6, [#allocation3]
    $region29: #{tpu_custom_call.1} parent=1 // pred_fallthru
      _
    // Predicated region
    $region30: #{tpu_custom_call.1} parent=1 // pred_check
      _
    $region31: #{tpu_custom_call.1} parent=1 // pred_check_branch
      %1500 = sbr.rel (0) target = $region33
    $region32: #{tpu_custom_call.1} parent=1 // pred_region
      %s1502 = ssub.s32 16, 16
      %1503 = vsyncadd [#allocation5], %s1502
      %s1505 = sshll.u32 [#allocation4], 4
      %s1506 = int_to_ptr.vmem [resolvable:$true] %s1505
      %1508 = dma.vmem_to_hbm [thread:$0]  %s1506, 16, %s7, [#allocation5]
    $region33: #{tpu_custom_call.1} parent=1 // pred_fallthru
      _
    // Predicated region
    $region34: #{tpu_custom_call.1} parent=1 // pred_check
      _
    $region35: #{tpu_custom_call.1} parent=1 // pred_check_branch
      %1510 = sbr.rel (0) target = $region37
    $region36: #{tpu_custom_call.1} parent=1 // pred_region
      %1511 = dma.done [#allocation3], 16
    $region37: #{tpu_custom_call.1} parent=1 // pred_fallthru
      _
    // Predicated region
    $region38: #{tpu_custom_call.1} parent=1 // pred_check
      _
    $region39: #{tpu_custom_call.1} parent=1 // pred_check_branch
      %1513 = sbr.rel (0) target = $region41
    $region40: #{tpu_custom_call.1} parent=1 // pred_region
      %1514 = dma.done [#allocation5], 16
    $region41: #{tpu_custom_call.1} parent=1 // pred_fallthru
      _
    %1515 = vsyncpa [#allocation3], 1
    %1516 = vsyncpa [#allocation5], 1

</llo_original>
